<compile_context>
chip_gen: v5e
topology: v5e:2x2
jax: 0.10.0
libtpu: 0.0.40
codegen_flags: <defaults>
</compile_context>

<pallas_src>
import functools

import jax
import jax.numpy as jnp
from jax import lax
from jax.experimental import pallas as pl
from jax.experimental.pallas import tpu as pltpu


def _round_up(v, m):
    return (v + m - 1) // m * m


def _bottleneck_kernel(H, W,
                       x_ref, w1_ref, w2_ref, w3_ref,
                       b1_ref, b2_ref, b3_ref,
                       o_ref, pad_ref):
    """One batch element per grid step.

    x_ref  : (1, H*W, Cp)       bf16 input, rows are (h, w) row-major
    w1_ref : (Cp, Cw_p)         bf16 1x1 conv #1 (bn1 scale folded in)
    w2_ref : (3, 3*Cw_p, Cw_p)  bf16 3x3 conv, layout [kh, kw*Cw_p + ci, co]
    w3_ref : (Cw_p, Cp)         bf16 1x1 conv #3 (bn3 scale folded in)
    b*_ref : (1, C)             f32 folded BatchNorm bias
    o_ref  : (1, H*W, Cp)       f32 output
    pad_ref: (H+2, W+16, Cw_p)  f32 zero-padded conv2 scratch; image lives at
                                rows [1, H+1) and aligned columns [8, 8+W).
    """
    HW = H * W
    Cw = w1_ref.shape[1]

    # ---- conv1 (1x1) + bn1 + relu : channel matmul (bf16 in, f32 acc) ----
    h1 = jnp.dot(x_ref[0], w1_ref[...], preferred_element_type=jnp.float32)
    h1 = jnp.maximum(h1 + b1_ref[...], 0.0)                     # (HW, Cw) f32

    # ---- conv2 (3x3, pad=1, stride=1) + bn2 + relu ----
    # Zero the scratch, write h1 into its interior (sublane-aligned store),
    # then every tap is a static slice of the padded buffer.
    pad_ref[...] = jnp.zeros_like(pad_ref)
    pad_ref[1:H + 1, 8:8 + W, :] = h1.reshape(H, W, Cw)

    acc = jnp.zeros((HW, Cw), jnp.float32)
    for kh in range(3):
        # Concatenate the 3 kw taps along the contraction dim -> K = 3*Cw.
        slab = jnp.concatenate(
            [pad_ref[kh:kh + H, 7 + kw:7 + kw + W, :].reshape(HW, Cw)
             for kw in range(3)], axis=1)
        acc = acc + jnp.dot(slab.astype(w2_ref.dtype), w2_ref[kh],
                            preferred_element_type=jnp.float32)
    h2 = jnp.maximum(acc + b2_ref[...], 0.0)                    # (HW, Cw) f32

    # ---- conv3 (1x1) + bn3 + residual add + relu ----
    h3 = jnp.dot(h2.astype(w3_ref.dtype), w3_ref[...],
                 preferred_element_type=jnp.float32)
    h3 = h3 + b3_ref[...]                                       # (HW, Cp) f32
    o_ref[0] = jnp.maximum(h3 + x_ref[0].astype(jnp.float32), 0.0)


def bottleneck_pallas(x_nhwc, params):
    (w1, w2, w3, s1, b1, s2, b2, s3, b3) = params
    N, H, W, Cin = x_nhwc.shape
    Cw = w1.shape[1]
    Cout = w3.shape[1]
    assert Cin == Cout, "identity residual path requires inplanes == planes*4"
    HW = H * W

    # Pad channel dims to the 128-lane width (lane-dense matmuls and stores).
    Cp = _round_up(max(Cin, Cout), 128)
    Cw_p = _round_up(Cw, 128)

    # Fold the BatchNorm scale into the conv weights; keep only the bias.
    w1f = w1 * s1                      # (Cin, Cw)   * (1, Cw)
    w2f = w2 * s2                      # (9, Cw, Cw) * (1, Cw)
    w3f = w3 * s3                      # (Cw, Cout)  * (1, Cout)

    pad2 = lambda a, r, c: jnp.pad(a, ((0, r - a.shape[0]), (0, c - a.shape[1])))
    w1p = pad2(w1f, Cp, Cw_p).astype(jnp.bfloat16)
    w2p = jnp.pad(w2f, ((0, 0), (0, Cw_p - Cw), (0, Cw_p - Cw)))
    w2p = w2p.reshape(3, 3 * Cw_p, Cw_p).astype(jnp.bfloat16)   # [kh, kw*Cw+ci, co]
    w3p = pad2(w3f, Cw_p, Cp).astype(jnp.bfloat16)
    b1p = pad2(b1, 1, Cw_p)
    b2p = pad2(b2, 1, Cw_p)
    b3p = pad2(b3, 1, Cp)

    x2 = jnp.pad(x_nhwc.reshape(N, HW, Cin),
                 ((0, 0), (0, 0), (0, Cp - Cin))).astype(jnp.bfloat16)

    kernel = functools.partial(_bottleneck_kernel, H, W)
    out = pl.pallas_call(
        kernel,
        out_shape=jax.ShapeDtypeStruct((N, HW, Cp), jnp.float32),
        grid_spec=pltpu.PrefetchScalarGridSpec(
            num_scalar_prefetch=0,
            grid=(N,),
            in_specs=[
                pl.BlockSpec((1, HW, Cp), lambda n: (n, 0, 0)),
                pl.BlockSpec((Cp, Cw_p), lambda n: (0, 0)),
                pl.BlockSpec((3, 3 * Cw_p, Cw_p), lambda n: (0, 0, 0)),
                pl.BlockSpec((Cw_p, Cp), lambda n: (0, 0)),
                pl.BlockSpec((1, Cw_p), lambda n: (0, 0)),
                pl.BlockSpec((1, Cw_p), lambda n: (0, 0)),
                pl.BlockSpec((1, Cp), lambda n: (0, 0)),
            ],
            out_specs=pl.BlockSpec((1, HW, Cp), lambda n: (n, 0, 0)),
            scratch_shapes=[pltpu.VMEM((H + 2, W + 16, Cw_p), jnp.float32)],
        ),
        compiler_params=pltpu.CompilerParams(
            dimension_semantics=("parallel",),
            vmem_limit_bytes=32 * 1024 * 1024),
    )(x2, w1p, w2p, w3p, b1p, b2p, b3p)
    return out[..., :Cout].reshape(N, H, W, Cout)


def make_params(key, inplanes, planes):
    """Deterministic synthetic parameters (Bottleneck.__init__ shapes)."""
    expansion = 4
    width = planes                      # base_width=64, groups=1
    cout = planes * expansion
    ks = jax.random.split(key, 12)
    eps = 1e-5

    def bn(kg, kb, km, kv, c):
        gamma = jax.random.uniform(kg, (c,), jnp.float32, 0.5, 1.5)
        beta = 0.1 * jax.random.normal(kb, (c,), jnp.float32)
        mean = 0.1 * jax.random.normal(km, (c,), jnp.float32)
        var = jax.random.uniform(kv, (c,), jnp.float32, 0.5, 1.5)
        scale = gamma / jnp.sqrt(var + eps)
        bias = beta - mean * scale
        return scale.reshape(1, c), bias.reshape(1, c)

    # conv weights stored in (Cin, Cout) / (tap, Cin, Cout) layout
    w1 = 0.2 * jax.random.normal(ks[0], (inplanes, width), jnp.float32)
    w2 = 0.2 * jax.random.normal(ks[1], (9, width, width), jnp.float32)
    w3 = 0.2 * jax.random.normal(ks[2], (width, cout), jnp.float32)
    s1, b1 = bn(ks[3], ks[4], ks[5], ks[6], width)
    s2, b2 = bn(ks[7], ks[8], ks[9], ks[6], width)
    s3, b3 = bn(ks[10], ks[11], ks[3], ks[9], cout)
    return (w1, w2, w3, s1, b1, s2, b2, s3, b3)


def bottleneck_reference(x_nhwc, params, mm_dtype=jnp.float32):
    """Pure-JAX reference. mm_dtype controls matmul/conv operand precision
    (f32 = exact module math; bf16 mirrors the kernel's MXU input precision).
    Accumulation, bias, residual and relu are f32 either way."""
    (w1, w2, w3, s1, b1, s2, b2, s3, b3) = params
    width = w1.shape[1]
    c = lambda a: a.astype(mm_dtype)
    h = jnp.einsum("nhwc,cd->nhwd", c(x_nhwc), c(w1 * s1),
                   preferred_element_type=jnp.float32)
    h = jnp.maximum(h + b1[0], 0.0)
    w2_hwio = (w2 * s2).reshape(3, 3, width, width)      # (kh, kw, ci, co)
    h = lax.conv_general_dilated(
        c(h), c(w2_hwio), window_strides=(1, 1), padding=((1, 1), (1, 1)),
        dimension_numbers=("NHWC", "HWIO", "NHWC"),
        preferred_element_type=jnp.float32)
    h = jnp.maximum(h + b2[0], 0.0)
    h = jnp.einsum("nhwc,cd->nhwd", c(h), c(w3 * s3),
                   preferred_element_type=jnp.float32)
    h = h + b3[0]
    return jnp.maximum(h + c(x_nhwc).astype(jnp.float32), 0.0)


if __name__ == "__main__":
    # Small shapes consistent with the module: identity path requires
    # inplanes == planes * expansion.
    N, planes, H, W = 2, 4, 8, 8
    inplanes = planes * 4                   # 16 channels in / out

    key = jax.random.PRNGKey(0)
    kx, kp = jax.random.split(key)
    x_nchw = jax.random.normal(kx, (N, inplanes, H, W), jnp.float32)
    params = make_params(kp, inplanes, planes)

    # NCHW (PyTorch convention) -> NHWC for the kernel.
    x_nhwc = jnp.transpose(x_nchw, (0, 2, 3, 1))

    out = bottleneck_pallas(x_nhwc, params)
    out = jax.block_until_ready(out)

    # Tight check against a reference that mirrors the kernel's bf16 matmul
    # inputs, plus a looser check against the pure-f32 module math.
    ref_bf16 = bottleneck_reference(x_nhwc, params, jnp.bfloat16)
    ref_f32 = bottleneck_reference(x_nhwc, params, jnp.float32)
    if not jnp.allclose(out, ref_bf16, rtol=2e-2, atol=2e-2):
        raise AssertionError("Pallas Bottleneck kernel mismatch vs bf16 reference")
    if not jnp.allclose(out, ref_f32, rtol=1e-1, atol=1e-1):
        raise AssertionError("Pallas Bottleneck kernel mismatch vs f32 reference")

    print("KERNEL_OK")
</pallas_src>

<mosaic_0001>
module attributes {stable_mosaic.version = 11 : i64} {
  func.func @_bottleneck_kernel(%arg0: i32, %arg1: memref<1x64x128xbf16, #tpu.memory_space<vmem>>, %arg2: memref<128x128xbf16, #tpu.memory_space<vmem>>, %arg3: memref<3x384x128xbf16, #tpu.memory_space<vmem>>, %arg4: memref<128x128xbf16, #tpu.memory_space<vmem>>, %arg5: memref<1x128xf32, #tpu.memory_space<vmem>>, %arg6: memref<1x128xf32, #tpu.memory_space<vmem>>, %arg7: memref<1x128xf32, #tpu.memory_space<vmem>>, %arg8: memref<1x64x128xf32, #tpu.memory_space<vmem>>, %arg9: memref<10x24x128xf32, #tpu.memory_space<vmem>>) attributes {dimension_semantics = [#tpu.dimension_semantics<parallel>], iteration_bounds = array<i64: 2>, scalar_prefetch = 0 : i64, scratch_operands = 1 : i64, tpu.core_type = #tpu.core_type<tc>, window_params = [{transform_indices = @transform_0, window_bounds = array<i64: 1, 64, 128>}, {pipeline_mode = #tpu.pipeline_mode<synchronous>, transform_indices = @transform_1, window_bounds = array<i64: 128, 128>}, {pipeline_mode = #tpu.pipeline_mode<synchronous>, transform_indices = @transform_2, window_bounds = array<i64: 3, 384, 128>}, {pipeline_mode = #tpu.pipeline_mode<synchronous>, transform_indices = @transform_3, window_bounds = array<i64: 128, 128>}, {pipeline_mode = #tpu.pipeline_mode<synchronous>, transform_indices = @transform_4, window_bounds = array<i64: 1, 128>}, {pipeline_mode = #tpu.pipeline_mode<synchronous>, transform_indices = @transform_5, window_bounds = array<i64: 1, 128>}, {pipeline_mode = #tpu.pipeline_mode<synchronous>, transform_indices = @transform_6, window_bounds = array<i64: 1, 128>}, {transform_indices = @transform_7, window_bounds = array<i64: 1, 64, 128>}]} {
    %c0 = arith.constant 0 : index
    %c0_0 = arith.constant 0 : index
    %c0_1 = arith.constant 0 : index
    %0 = vector.load %arg1[%c0, %c0_0, %c0_1] : memref<1x64x128xbf16, #tpu.memory_space<vmem>>, vector<1x64x128xbf16>
    %1 = vector.shape_cast %0 : vector<1x64x128xbf16> to vector<64x128xbf16>
    %c0_2 = arith.constant 0 : index
    %c0_3 = arith.constant 0 : index
    %2 = vector.load %arg2[%c0_2, %c0_3] : memref<128x128xbf16, #tpu.memory_space<vmem>>, vector<128x128xbf16>
    %cst = arith.constant dense<0.000000e+00> : vector<64x128xf32>
    %3 = tpu.matmul %1, %2, %cst {dimension_numbers = #tpu.dot_dimension_numbers<[1], [0], [0], [1], [0, 0, 1, 1], [], []>} : vector<64x128xbf16>, vector<128x128xbf16>, vector<64x128xf32> -> vector<64x128xf32>
    %c0_4 = arith.constant 0 : index
    %c0_5 = arith.constant 0 : index
    %4 = vector.load %arg5[%c0_4, %c0_5] : memref<1x128xf32, #tpu.memory_space<vmem>>, vector<1x128xf32>
    %5 = vector.broadcast %4 : vector<1x128xf32> to vector<64x128xf32>
    %6 = arith.addf %3, %5 : vector<64x128xf32>
    %cst_6 = arith.constant 0.000000e+00 : f32
    %7 = vector.broadcast %cst_6 : f32 to vector<64x128xf32>
    %8 = arith.maximumf %6, %7 : vector<64x128xf32>
    %cst_7 = arith.constant 0.000000e+00 : f32
    %9 = vector.broadcast %cst_7 : f32 to vector<10x24x128xf32>
    %c0_8 = arith.constant 0 : index
    %c0_9 = arith.constant 0 : index
    %c0_10 = arith.constant 0 : index
    %10 = vector.load %arg9[%c0_8, %c0_9, %c0_10] : memref<10x24x128xf32, #tpu.memory_space<vmem>>, vector<10x24x128xf32>
    tpu.vector_store %arg9[%c0_8, %c0_9, %c0_10], %9 {strides = array<i32>} : memref<10x24x128xf32, #tpu.memory_space<vmem>>, vector<10x24x128xf32>,
    %11 = vector.shape_cast %8 : vector<64x128xf32> to vector<8x8x128xf32>
    %c1 = arith.constant 1 : index
    %c8 = arith.constant 8 : index
    %c0_11 = arith.constant 0 : index
    %12 = vector.load %arg9[%c1, %c8, %c0_11] : memref<10x24x128xf32, #tpu.memory_space<vmem>>, vector<8x8x128xf32>
    tpu.vector_store %arg9[%c1, %c8, %c0_11], %11 {strides = array<i32>} : memref<10x24x128xf32, #tpu.memory_space<vmem>>, vector<8x8x128xf32>,
    %cst_12 = arith.constant 0.000000e+00 : f32
    %13 = vector.broadcast %cst_12 : f32 to vector<64x128xf32>
    %c0_13 = arith.constant 0 : index
    %c7 = arith.constant 7 : index
    %c0_14 = arith.constant 0 : index
    %14 = vector.load %arg9[%c0_13, %c7, %c0_14] : memref<10x24x128xf32, #tpu.memory_space<vmem>>, vector<8x8x128xf32>
    %15 = vector.shape_cast %14 : vector<8x8x128xf32> to vector<64x128xf32>
    %c0_15 = arith.constant 0 : index
    %c8_16 = arith.constant 8 : index
    %c0_17 = arith.constant 0 : index
    %16 = vector.load %arg9[%c0_15, %c8_16, %c0_17] : memref<10x24x128xf32, #tpu.memory_space<vmem>>, vector<8x8x128xf32>
    %17 = vector.shape_cast %16 : vector<8x8x128xf32> to vector<64x128xf32>
    %c0_18 = arith.constant 0 : index
    %c9 = arith.constant 9 : index
    %c0_19 = arith.constant 0 : index
    %18 = vector.load %arg9[%c0_18, %c9, %c0_19] : memref<10x24x128xf32, #tpu.memory_space<vmem>>, vector<8x8x128xf32>
    %19 = vector.shape_cast %18 : vector<8x8x128xf32> to vector<64x128xf32>
    %20 = tpu.concatenate %15, %17, %19 in 1 : vector<64x128xf32>, vector<64x128xf32>, vector<64x128xf32> -> vector<64x384xf32>
    %21 = arith.truncf %20 : vector<64x384xf32> to vector<64x384xbf16>
    %c0_20 = arith.constant 0 : index
    %c0_21 = arith.constant 0 : index
    %c0_22 = arith.constant 0 : index
    %22 = vector.load %arg3[%c0_20, %c0_21, %c0_22] : memref<3x384x128xbf16, #tpu.memory_space<vmem>>, vector<1x384x128xbf16>
    %23 = vector.shape_cast %22 : vector<1x384x128xbf16> to vector<384x128xbf16>
    %cst_23 = arith.constant dense<0.000000e+00> : vector<64x128xf32>
    %24 = tpu.matmul %21, %23, %cst_23 {dimension_numbers = #tpu.dot_dimension_numbers<[1], [0], [0], [1], [0, 0, 1, 1], [], []>} : vector<64x384xbf16>, vector<384x128xbf16>, vector<64x128xf32> -> vector<64x128xf32>
    %25 = arith.addf %13, %24 : vector<64x128xf32>
    %c1_24 = arith.constant 1 : index
    %c7_25 = arith.constant 7 : index
    %c0_26 = arith.constant 0 : index
    %26 = vector.load %arg9[%c1_24, %c7_25, %c0_26] : memref<10x24x128xf32, #tpu.memory_space<vmem>>, vector<8x8x128xf32>
    %27 = vector.shape_cast %26 : vector<8x8x128xf32> to vector<64x128xf32>
    %c1_27 = arith.constant 1 : index
    %c8_28 = arith.constant 8 : index
    %c0_29 = arith.constant 0 : index
    %28 = vector.load %arg9[%c1_27, %c8_28, %c0_29] : memref<10x24x128xf32, #tpu.memory_space<vmem>>, vector<8x8x128xf32>
    %29 = vector.shape_cast %28 : vector<8x8x128xf32> to vector<64x128xf32>
    %c1_30 = arith.constant 1 : index
    %c9_31 = arith.constant 9 : index
    %c0_32 = arith.constant 0 : index
    %30 = vector.load %arg9[%c1_30, %c9_31, %c0_32] : memref<10x24x128xf32, #tpu.memory_space<vmem>>, vector<8x8x128xf32>
    %31 = vector.shape_cast %30 : vector<8x8x128xf32> to vector<64x128xf32>
    %32 = tpu.concatenate %27, %29, %31 in 1 : vector<64x128xf32>, vector<64x128xf32>, vector<64x128xf32> -> vector<64x384xf32>
    %33 = arith.truncf %32 : vector<64x384xf32> to vector<64x384xbf16>
    %c1_33 = arith.constant 1 : index
    %c0_34 = arith.constant 0 : index
    %c0_35 = arith.constant 0 : index
    %34 = vector.load %arg3[%c1_33, %c0_34, %c0_35] : memref<3x384x128xbf16, #tpu.memory_space<vmem>>, vector<1x384x128xbf16>
    %35 = vector.shape_cast %34 : vector<1x384x128xbf16> to vector<384x128xbf16>
    %cst_36 = arith.constant dense<0.000000e+00> : vector<64x128xf32>
    %36 = tpu.matmul %33, %35, %cst_36 {dimension_numbers = #tpu.dot_dimension_numbers<[1], [0], [0], [1], [0, 0, 1, 1], [], []>} : vector<64x384xbf16>, vector<384x128xbf16>, vector<64x128xf32> -> vector<64x128xf32>
    %37 = arith.addf %25, %36 : vector<64x128xf32>
    %c2 = arith.constant 2 : index
    %c7_37 = arith.constant 7 : index
    %c0_38 = arith.constant 0 : index
    %38 = vector.load %arg9[%c2, %c7_37, %c0_38] : memref<10x24x128xf32, #tpu.memory_space<vmem>>, vector<8x8x128xf32>
    %39 = vector.shape_cast %38 : vector<8x8x128xf32> to vector<64x128xf32>
    %c2_39 = arith.constant 2 : index
    %c8_40 = arith.constant 8 : index
    %c0_41 = arith.constant 0 : index
    %40 = vector.load %arg9[%c2_39, %c8_40, %c0_41] : memref<10x24x128xf32, #tpu.memory_space<vmem>>, vector<8x8x128xf32>
    %41 = vector.shape_cast %40 : vector<8x8x128xf32> to vector<64x128xf32>
    %c2_42 = arith.constant 2 : index
    %c9_43 = arith.constant 9 : index
    %c0_44 = arith.constant 0 : index
    %42 = vector.load %arg9[%c2_42, %c9_43, %c0_44] : memref<10x24x128xf32, #tpu.memory_space<vmem>>, vector<8x8x128xf32>
    %43 = vector.shape_cast %42 : vector<8x8x128xf32> to vector<64x128xf32>
    %44 = tpu.concatenate %39, %41, %43 in 1 : vector<64x128xf32>, vector<64x128xf32>, vector<64x128xf32> -> vector<64x384xf32>
    %45 = arith.truncf %44 : vector<64x384xf32> to vector<64x384xbf16>
    %c2_45 = arith.constant 2 : index
    %c0_46 = arith.constant 0 : index
    %c0_47 = arith.constant 0 : index
    %46 = vector.load %arg3[%c2_45, %c0_46, %c0_47] : memref<3x384x128xbf16, #tpu.memory_space<vmem>>, vector<1x384x128xbf16>
    %47 = vector.shape_cast %46 : vector<1x384x128xbf16> to vector<384x128xbf16>
    %cst_48 = arith.constant dense<0.000000e+00> : vector<64x128xf32>
    %48 = tpu.matmul %45, %47, %cst_48 {dimension_numbers = #tpu.dot_dimension_numbers<[1], [0], [0], [1], [0, 0, 1, 1], [], []>} : vector<64x384xbf16>, vector<384x128xbf16>, vector<64x128xf32> -> vector<64x128xf32>
    %49 = arith.addf %37, %48 : vector<64x128xf32>
    %c0_49 = arith.constant 0 : index
    %c0_50 = arith.constant 0 : index
    %50 = vector.load %arg6[%c0_49, %c0_50] : memref<1x128xf32, #tpu.memory_space<vmem>>, vector<1x128xf32>
    %51 = vector.broadcast %50 : vector<1x128xf32> to vector<64x128xf32>
    %52 = arith.addf %49, %51 : vector<64x128xf32>
    %cst_51 = arith.constant 0.000000e+00 : f32
    %53 = vector.broadcast %cst_51 : f32 to vector<64x128xf32>
    %54 = arith.maximumf %52, %53 : vector<64x128xf32>
    %55 = arith.truncf %54 : vector<64x128xf32> to vector<64x128xbf16>
    %c0_52 = arith.constant 0 : index
    %c0_53 = arith.constant 0 : index
    %56 = vector.load %arg4[%c0_52, %c0_53] : memref<128x128xbf16, #tpu.memory_space<vmem>>, vector<128x128xbf16>
    %cst_54 = arith.constant dense<0.000000e+00> : vector<64x128xf32>
    %57 = tpu.matmul %55, %56, %cst_54 {dimension_numbers = #tpu.dot_dimension_numbers<[1], [0], [0], [1], [0, 0, 1, 1], [], []>} : vector<64x128xbf16>, vector<128x128xbf16>, vector<64x128xf32> -> vector<64x128xf32>
    %c0_55 = arith.constant 0 : index
    %c0_56 = arith.constant 0 : index
    %58 = vector.load %arg7[%c0_55, %c0_56] : memref<1x128xf32, #tpu.memory_space<vmem>>, vector<1x128xf32>
    %59 = vector.broadcast %58 : vector<1x128xf32> to vector<64x128xf32>
    %60 = arith.addf %57, %59 : vector<64x128xf32>
    %c0_57 = arith.constant 0 : index
    %c0_58 = arith.constant 0 : index
    %c0_59 = arith.constant 0 : index
    %61 = vector.load %arg1[%c0_57, %c0_58, %c0_59] : memref<1x64x128xbf16, #tpu.memory_space<vmem>>, vector<1x64x128xbf16>
    %62 = vector.shape_cast %61 : vector<1x64x128xbf16> to vector<64x128xbf16>
    %63 = arith.extf %62 : vector<64x128xbf16> to vector<64x128xf32>
    %64 = arith.addf %60, %63 : vector<64x128xf32>
    %cst_60 = arith.constant 0.000000e+00 : f32
    %65 = vector.broadcast %cst_60 : f32 to vector<64x128xf32>
    %66 = arith.maximumf %64, %65 : vector<64x128xf32>
    %c0_61 = arith.constant 0 : index
    %c0_62 = arith.constant 0 : index
    %c0_63 = arith.constant 0 : index
    %67 = vector.load %arg8[%c0_61, %c0_62, %c0_63] : memref<1x64x128xf32, #tpu.memory_space<vmem>>, vector<1x64x128xf32>
    %68 = vector.shape_cast %67 : vector<1x64x128xf32> to vector<64x128xf32>
    %69 = vector.shape_cast %66 : vector<64x128xf32> to vector<1x64x128xf32>
    tpu.vector_store %arg8[%c0_61, %c0_62, %c0_63], %69 {strides = array<i32>} : memref<1x64x128xf32, #tpu.memory_space<vmem>>, vector<1x64x128xf32>,
    return
  }
  func.func @transform_0(%arg0: i32) -> (i32, i32, i32) {
    %c0_i32 = arith.constant 0 : i32
    %c0_i32_0 = arith.constant 0 : i32
    %c0_i32_1 = arith.constant 0 : i32
    return %arg0, %c0_i32, %c0_i32_0 : i32, i32, i32
  }
  func.func @transform_1(%arg0: i32) -> (i32, i32) {
    %c0_i32 = arith.constant 0 : i32
    %c0_i32_0 = arith.constant 0 : i32
    %c0_i32_1 = arith.constant 0 : i32
    return %c0_i32, %c0_i32_0 : i32, i32
  }
  func.func @transform_2(%arg0: i32) -> (i32, i32, i32) {
    %c0_i32 = arith.constant 0 : i32
    %c0_i32_0 = arith.constant 0 : i32
    %c0_i32_1 = arith.constant 0 : i32
    %c0_i32_2 = arith.constant 0 : i32
    return %c0_i32, %c0_i32_0, %c0_i32_1 : i32, i32, i32
  }
  func.func @transform_3(%arg0: i32) -> (i32, i32) {
    %c0_i32 = arith.constant 0 : i32
    %c0_i32_0 = arith.constant 0 : i32
    %c0_i32_1 = arith.constant 0 : i32
    return %c0_i32, %c0_i32_0 : i32, i32
  }
  func.func @transform_4(%arg0: i32) -> (i32, i32) {
    %c0_i32 = arith.constant 0 : i32
    %c0_i32_0 = arith.constant 0 : i32
    %c0_i32_1 = arith.constant 0 : i32
    return %c0_i32, %c0_i32_0 : i32, i32
  }
  func.func @transform_5(%arg0: i32) -> (i32, i32) {
    %c0_i32 = arith.constant 0 : i32
    %c0_i32_0 = arith.constant 0 : i32
    %c0_i32_1 = arith.constant 0 : i32
    return %c0_i32, %c0_i32_0 : i32, i32
  }
  func.func @transform_6(%arg0: i32) -> (i32, i32) {
    %c0_i32 = arith.constant 0 : i32
    %c0_i32_0 = arith.constant 0 : i32
    %c0_i32_1 = arith.constant 0 : i32
    return %c0_i32, %c0_i32_0 : i32, i32
  }
  func.func @transform_7(%arg0: i32) -> (i32, i32, i32) {
    %c0_i32 = arith.constant 0 : i32
    %c0_i32_0 = arith.constant 0 : i32
    %c0_i32_1 = arith.constant 0 : i32
    return %arg0, %c0_i32, %c0_i32_0 : i32, i32, i32
  }
}

</mosaic_0001>

<llo_original>
// kernel: tpu_custom_call.1
$region0: #{tpu_custom_call.1}
  #allocation0 [shape = 'u32[]', space=smem, size = 0x4, offset = 0x4, fixed_abs, tag = 'smem constant byte address 0x4 - core index']
  #allocation1 [shape = 'u32[72,128]{1,0:T(1,128)}', space=vmem, size = 0x9000, scoped, tag = 'internal scratch']
  #allocation2 [shape = 'f32[10,24,128]{2,1,0:T(8,128)}', space=vmem, size = 0x1e000, scoped, tag = 'scratch operand']
  %s0 = inlined_call_operand.hbm [shape: bf16[2,64,128], index: 0, kind: input, shape index: {}]
  %s1 = inlined_call_operand.hbm [shape: bf16[128,128], index: 1, kind: input, shape index: {}]
  %s2 = inlined_call_operand.hbm [shape: bf16[3,384,128], index: 2, kind: input, shape index: {}]
  %s3 = inlined_call_operand.hbm [shape: bf16[128,128], index: 3, kind: input, shape index: {}]
  %s4 = inlined_call_operand.vmem [shape: f32[1,128], index: 4, kind: input, shape index: {}]
  %s5 = inlined_call_operand.vmem [shape: f32[1,128], index: 5, kind: input, shape index: {}]
  %s6 = inlined_call_operand.vmem [shape: f32[1,128], index: 6, kind: input, shape index: {}]
  %s7 = inlined_call_operand.hbm [shape: f32[2,64,128], index: 7, kind: output, shape index: {}]
  %s8 = sld [smem:[#allocation0]]
  $region77: #{tpu_custom_call.1} parent=0
    _
  %s10 = ssub.s32 1, %s8
  %s11 = scalar_select 0, %s10, %s8
  $region1: #{tpu_custom_call.1} parent=0
    #allocation3 [shape = 'u8[32768]{0}', space=vmem, size = 0x8000, scoped, tag = 'input window, operand 0']
    #allocation4 [shape = 's32[2]{0}', space=sflag, size = 0x8, scoped, tag = 'scoped memory for tpu_custom_call.1']
    #allocation5 [shape = 's32[2]{0}', space=sflag, size = 0x8, scoped, tag = 'scoped memory for tpu_custom_call.1']
    #allocation6 [shape = 'u8[32768]{0}', space=vmem, size = 0x8000, scoped, tag = 'input window, operand 1, single buffered']
    #allocation7 [shape = 's32[1]{0}', space=sflag, size = 0x4, scoped, tag = 'scoped memory for tpu_custom_call.1']
    #allocation8 [shape = 'u8[294912]{0}', space=vmem, size = 0x48000, scoped, tag = 'input window, operand 2, single buffered']
    #allocation9 [shape = 'u8[32768]{0}', space=vmem, size = 0x8000, scoped, tag = 'input window, operand 3, single buffered']
    #allocation10 [shape = 's32[1]{0}', space=sflag, size = 0x4, scoped, tag = 'scoped memory for tpu_custom_call.1']
    #allocation11 [shape = 'u8[65536]{0}', space=vmem, size = 0x10000, scoped, tag = 'output window, operand 0']
    %12 = vsyncpa [#allocation4], 0
    %s13 = scalar_lea.sflag [#allocation4], 1
    %14 = vsyncpa %s13, 0
    %15 = vsyncpa [#allocation7], 0
    %16 = vsyncpa [#allocation10], 0
    %17 = vsyncpa [#allocation5], 0
    %s18 = scalar_lea.sflag [#allocation5], 1
    %19 = vsyncpa %s18, 0
    loop: start=0, step=1, limit=4
    $region2: #{tpu_custom_call.1} parent=1 // loop_pre_header
      _
    $region3: #{tpu_custom_call.1} parent=1 // loop_header
      %s21 = sphi 0, %s25
      %p22 = scmp.ge.s32.totalorder %s21, 4
      %s31 = sphi 0, %s33
      %s34 = sphi 0, %s31
      %s35 = sphi 0, %s34
      %s51 = sphi 0, %s35
      %s55 = sphi 0, %s55
      %s57 = sphi 0, %s55
      %s58 = sphi 0, %s57
      %s72 = sphi 0, %s58
      %s76 = sphi 0, %s76
      %s78 = sphi 0, %s76
      %s79 = sphi 0, %s78
      %s93 = sphi 0, %s79
      %s97 = sphi 0, %s97
      %s99 = sphi 0, %s97
      %s100 = sphi 0, %s99
      %s114 = sphi 0, %s100
      %s118 = sphi 0, %s118
      %s120 = sphi 0, %s118
      %s121 = sphi 0, %s120
      %s135 = sphi 0, %s121
      %s139 = sphi 0, %s139
      %s141 = sphi 0, %s139
      %s142 = sphi 0, %s141
      %s156 = sphi 0, %s142
      %s160 = sphi 0, %s160
      %s162 = sphi 0, %s160
      %s163 = sphi 0, %s162
      %s177 = sphi 0, %s163
      %s183 = sphi 0, %s185
      %s186 = sphi 0, %s183
      %s187 = sphi 0, %s186
      %s203 = sphi 0, %s187
    $region4: #{tpu_custom_call.1} parent=1 // loop_header_branch
      %24 = sbr.rel (%p22) target = $region8
    $region5: #{tpu_custom_call.1} parent=1 // loop_body
      %s26 = ssub.s32 %s21, 1
      %s27 = ssub.s32 %s21, 2
      %s28 = sadd.s32 %s21, 1
      %s29 = ssub.s32 %s21, %s28
      %p30 = scmp.eq.s32.totalorder %s29, 0
      %s32 = sadd.s32 %s31, 1
      %s33 = scalar_select %p30, %s31, %s32
      %p36 = pneg %p30
      %p37 = scmp.eq.s32.totalorder %s21, 1
      %p38 = por %p36, %p37
      %p39 = scmp.ne.s32.totalorder %s31, %s34
      %p40 = scmp.eq.s32.totalorder %s21, 0
      %p41 = por %p39, %p40
      %p42 = scmp.ne.s32.totalorder %s31, %s34
      %p43 = scmp.eq.s32.totalorder %s26, 1
      %p44 = por %p42, %p43
      %p45 = scmp.ne.s32.totalorder %s34, %s35
      %p46 = scmp.eq.s32.totalorder %s26, 0
      %p47 = por %p45, %p46
      %p48 = scmp.ne.s32.totalorder %s34, %s35
      %p49 = scmp.eq.s32.totalorder %s27, 1
      %p50 = por %p48, %p49
      %p52 = scmp.ne.s32.totalorder %s35, %s51
      %p53 = scmp.eq.s32.totalorder %s27, 0
      %p54 = por %p52, %p53
      %s56 = sadd.s32 %s55, 1
      %p59 = scmp.eq.s32.totalorder %s21, 1
      %p60 = scmp.ne.s32.totalorder %s55, %s57
      %p61 = scmp.eq.s32.totalorder %s21, 0
      %p62 = por %p60, %p61
      %p63 = scmp.ne.s32.totalorder %s55, %s57
      %p64 = scmp.eq.s32.totalorder %s26, 1
      %p65 = por %p63, %p64
      %p66 = scmp.ne.s32.totalorder %s57, %s58
      %p67 = scmp.eq.s32.totalorder %s26, 0
      %p68 = por %p66, %p67
      %p69 = scmp.ne.s32.totalorder %s57, %s58
      %p70 = scmp.eq.s32.totalorder %s27, 1
      %p71 = por %p69, %p70
      %p73 = scmp.ne.s32.totalorder %s58, %s72
      %p74 = scmp.eq.s32.totalorder %s27, 0
      %p75 = por %p73, %p74
      %s77 = sadd.s32 %s76, 1
      %p80 = scmp.eq.s32.totalorder %s21, 1
      %p81 = scmp.ne.s32.totalorder %s76, %s78
      %p82 = scmp.eq.s32.totalorder %s21, 0
      %p83 = por %p81, %p82
      %p84 = scmp.ne.s32.totalorder %s76, %s78
      %p85 = scmp.eq.s32.totalorder %s26, 1
      %p86 = por %p84, %p85
      %p87 = scmp.ne.s32.totalorder %s78, %s79
      %p88 = scmp.eq.s32.totalorder %s26, 0
      %p89 = por %p87, %p88
      %p90 = scmp.ne.s32.totalorder %s78, %s79
      %p91 = scmp.eq.s32.totalorder %s27, 1
      %p92 = por %p90, %p91
      %p94 = scmp.ne.s32.totalorder %s79, %s93
      %p95 = scmp.eq.s32.totalorder %s27, 0
      %p96 = por %p94, %p95
      %s98 = sadd.s32 %s97, 1
      %p101 = scmp.eq.s32.totalorder %s21, 1
      %p102 = scmp.ne.s32.totalorder %s97, %s99
      %p103 = scmp.eq.s32.totalorder %s21, 0
      %p104 = por %p102, %p103
      %p105 = scmp.ne.s32.totalorder %s97, %s99
      %p106 = scmp.eq.s32.totalorder %s26, 1
      %p107 = por %p105, %p106
      %p108 = scmp.ne.s32.totalorder %s99, %s100
      %p109 = scmp.eq.s32.totalorder %s26, 0
      %p110 = por %p108, %p109
      %p111 = scmp.ne.s32.totalorder %s99, %s100
      %p112 = scmp.eq.s32.totalorder %s27, 1
      %p113 = por %p111, %p112
      %p115 = scmp.ne.s32.totalorder %s100, %s114
      %p116 = scmp.eq.s32.totalorder %s27, 0
      %p117 = por %p115, %p116
      %s119 = sadd.s32 %s118, 1
      %p122 = scmp.eq.s32.totalorder %s21, 1
      %p123 = scmp.ne.s32.totalorder %s118, %s120
      %p124 = scmp.eq.s32.totalorder %s21, 0
      %p125 = por %p123, %p124
      %p126 = scmp.ne.s32.totalorder %s118, %s120
      %p127 = scmp.eq.s32.totalorder %s26, 1
      %p128 = por %p126, %p127
      %p129 = scmp.ne.s32.totalorder %s120, %s121
      %p130 = scmp.eq.s32.totalorder %s26, 0
      %p131 = por %p129, %p130
      %p132 = scmp.ne.s32.totalorder %s120, %s121
      %p133 = scmp.eq.s32.totalorder %s27, 1
      %p134 = por %p132, %p133
      %p136 = scmp.ne.s32.totalorder %s121, %s135
      %p137 = scmp.eq.s32.totalorder %s27, 0
      %p138 = por %p136, %p137
      %s140 = sadd.s32 %s139, 1
      %p143 = scmp.eq.s32.totalorder %s21, 1
      %p144 = scmp.ne.s32.totalorder %s139, %s141
      %p145 = scmp.eq.s32.totalorder %s21, 0
      %p146 = por %p144, %p145
      %p147 = scmp.ne.s32.totalorder %s139, %s141
      %p148 = scmp.eq.s32.totalorder %s26, 1
      %p149 = por %p147, %p148
      %p150 = scmp.ne.s32.totalorder %s141, %s142
      %p151 = scmp.eq.s32.totalorder %s26, 0
      %p152 = por %p150, %p151
      %p153 = scmp.ne.s32.totalorder %s141, %s142
      %p154 = scmp.eq.s32.totalorder %s27, 1
      %p155 = por %p153, %p154
      %p157 = scmp.ne.s32.totalorder %s142, %s156
      %p158 = scmp.eq.s32.totalorder %s27, 0
      %p159 = por %p157, %p158
      %s161 = sadd.s32 %s160, 1
      %p164 = scmp.eq.s32.totalorder %s21, 1
      %p165 = scmp.ne.s32.totalorder %s160, %s162
      %p166 = scmp.eq.s32.totalorder %s21, 0
      %p167 = por %p165, %p166
      %p168 = scmp.ne.s32.totalorder %s160, %s162
      %p169 = scmp.eq.s32.totalorder %s26, 1
      %p170 = por %p168, %p169
      %p171 = scmp.ne.s32.totalorder %s162, %s163
      %p172 = scmp.eq.s32.totalorder %s26, 0
      %p173 = por %p171, %p172
      %p174 = scmp.ne.s32.totalorder %s162, %s163
      %p175 = scmp.eq.s32.totalorder %s27, 1
      %p176 = por %p174, %p175
      %p178 = scmp.ne.s32.totalorder %s163, %s177
      %p179 = scmp.eq.s32.totalorder %s27, 0
      %p180 = por %p178, %p179
      %s181 = ssub.s32 %s21, %s28
      %p182 = scmp.eq.s32.totalorder %s181, 0
      %s184 = sadd.s32 %s183, 1
      %s185 = scalar_select %p182, %s183, %s184
      %p188 = pneg %p182
      %p189 = scmp.eq.s32.totalorder %s21, 1
      %p190 = por %p188, %p189
      %p191 = scmp.ne.s32.totalorder %s183, %s186
      %p192 = scmp.eq.s32.totalorder %s21, 0
      %p193 = por %p191, %p192
      %p194 = scmp.ne.s32.totalorder %s183, %s186
      %p195 = scmp.eq.s32.totalorder %s26, 1
      %p196 = por %p194, %p195
      %p197 = scmp.ne.s32.totalorder %s186, %s187
      %p198 = scmp.eq.s32.totalorder %s26, 0
      %p199 = por %p197, %p198
      %p200 = scmp.ne.s32.totalorder %s186, %s187
      %p201 = scmp.eq.s32.totalorder %s27, 1
      %p202 = por %p200, %p201
      %p204 = scmp.ne.s32.totalorder %s187, %s203
      %p205 = scmp.eq.s32.totalorder %s27, 0
      %p206 = por %p204, %p205
      %p207 = scmp.le.s32.totalorder 1, %s21
      %p208 = scmp.lt.s32.totalorder %s21, 3
      %p209 = pnand %p207, %p208
      %p210 = pneg %p209
      // Predicated region
      $region9: #{tpu_custom_call.1} parent=5 // pred_check
        _
      $region10: #{tpu_custom_call.1} parent=5 // pred_check_branch
        %212 = sbr.rel (%p209) target = $region12
      $region11: #{tpu_custom_call.1} parent=5 // pred_region
        %s213 = ssub.s32 %s21, 1
        // Predicated region
        $region13: #{tpu_custom_call.1} parent=11 // pred_check
          %p214 = pneg %p68
        $region14: #{tpu_custom_call.1} parent=11 // pred_check_branch
          %216 = sbr.rel (%p214) target = $region16
        $region15: #{tpu_custom_call.1} parent=11 // pred_region
          %218 = vsyncadd [#allocation7], 0
          %s219 = sshll.u32 %s1, 4
          %s220 = int_to_ptr.hbm [resolvable:$true] %s219
          %s221 = sshll.u32 [#allocation6], 4
          %s222 = int_to_ptr.vmem [resolvable:$true] %s221
          %227 = dma.hbm_to_vmem [thread:$0]  %s220, 1024, %s222, [#allocation7], 64, 64, 4
        $region16: #{tpu_custom_call.1} parent=11 // pred_fallthru
          _
        // Predicated region
        $region17: #{tpu_custom_call.1} parent=11 // pred_check
          %p228 = pneg %p89
        $region18: #{tpu_custom_call.1} parent=11 // pred_check_branch
          %230 = sbr.rel (%p228) target = $region20
        $region19: #{tpu_custom_call.1} parent=11 // pred_region
          %232 = vsyncadd [#allocation7], 0
          %s233 = sshll.u32 %s2, 4
          %s234 = int_to_ptr.hbm [resolvable:$true] %s233
          %s235 = sshll.u32 [#allocation8], 4
          %s236 = int_to_ptr.vmem [resolvable:$true] %s235
          %241 = dma.hbm_to_vmem [thread:$0]  %s234, 9216, %s236, [#allocation7], 64, 64, 4
        $region20: #{tpu_custom_call.1} parent=11 // pred_fallthru
          _
        // Predicated region
        $region21: #{tpu_custom_call.1} parent=11 // pred_check
          %p242 = pneg %p110
        $region22: #{tpu_custom_call.1} parent=11 // pred_check_branch
          %244 = sbr.rel (%p242) target = $region24
        $region23: #{tpu_custom_call.1} parent=11 // pred_region
          %246 = vsyncadd [#allocation10], 0
          %s247 = sshll.u32 %s3, 4
          %s248 = int_to_ptr.hbm [resolvable:$true] %s247
          %s249 = sshll.u32 [#allocation9], 4
          %s250 = int_to_ptr.vmem [resolvable:$true] %s249
          %255 = dma.hbm_to_vmem [thread:$0]  %s248, 1024, %s250, [#allocation10], 64, 64, 4
        $region24: #{tpu_custom_call.1} parent=11 // pred_fallthru
          _
        // Predicated region
        $region25: #{tpu_custom_call.1} parent=11 // pred_check
          %p256 = pneg %p131
        $region26: #{tpu_custom_call.1} parent=11 // pred_check_branch
          %258 = sbr.rel (%p256) target = $region28
        $region27: #{tpu_custom_call.1} parent=11 // pred_region
          _
        $region28: #{tpu_custom_call.1} parent=11 // pred_fallthru
          _
        // Predicated region
        $region29: #{tpu_custom_call.1} parent=11 // pred_check
          %p259 = pneg %p152
        $region30: #{tpu_custom_call.1} parent=11 // pred_check_branch
          %261 = sbr.rel (%p259) target = $region32
        $region31: #{tpu_custom_call.1} parent=11 // pred_region
          _
        $region32: #{tpu_custom_call.1} parent=11 // pred_fallthru
          _
        // Predicated region
        $region33: #{tpu_custom_call.1} parent=11 // pred_check
          %p262 = pneg %p173
        $region34: #{tpu_custom_call.1} parent=11 // pred_check_branch
          %264 = sbr.rel (%p262) target = $region36
        $region35: #{tpu_custom_call.1} parent=11 // pred_region
          _
        $region36: #{tpu_custom_call.1} parent=11 // pred_fallthru
          _
      $region12: #{tpu_custom_call.1} parent=5 // pred_fallthru
        _
      %p265 = scmp.lt.s32.totalorder %s21, 2
      // Predicated region
      $region37: #{tpu_custom_call.1} parent=5 // pred_check
        %p266 = pneg %p265
      $region38: #{tpu_custom_call.1} parent=5 // pred_check_branch
        %268 = sbr.rel (%p266) target = $region40
      $region39: #{tpu_custom_call.1} parent=5 // pred_region
        // Predicated region
        $region41: #{tpu_custom_call.1} parent=39 // pred_check
          %p269 = pneg %p41
        $region42: #{tpu_custom_call.1} parent=39 // pred_check_branch
          %271 = sbr.rel (%p269) target = $region44
        $region43: #{tpu_custom_call.1} parent=39 // pred_region
          %s272 = sand.u32 %s31, 1
          %s273 = scalar_lea.sflag [#allocation4], %s272
          %s274 = sand.u32 %s31, 1
          %s275 = smul.addr %s274, 32
          %s276 = scalar_lea.vmem [#allocation3], %s275
          %278 = vsyncadd %s273, 0
          %s279 = smul.addr %s21, 8
          %s280 = smul.addr %s279, 4
          %s281 = scalar_lea.hbm %s0, %s280
          %s282 = sshll.u32 %s281, 4
          %s283 = int_to_ptr.hbm [resolvable:$true] %s282
          %s284 = sshll.u32 %s276, 4
          %s285 = int_to_ptr.vmem [resolvable:$true] %s284
          %290 = dma.hbm_to_vmem [thread:$0]  %s283, 512, %s285, %s273, 64, 64, 4
        $region44: #{tpu_custom_call.1} parent=39 // pred_fallthru
          _
      $region40: #{tpu_custom_call.1} parent=5 // pred_fallthru
        _
      %p291 = scmp.le.s32.totalorder 1, %s21
      %p292 = scmp.lt.s32.totalorder %s21, 3
      %p293 = pnand %p291, %p292
      %p294 = pneg %p293
      // Predicated region
      $region45: #{tpu_custom_call.1} parent=5 // pred_check
        _
      $region46: #{tpu_custom_call.1} parent=5 // pred_check_branch
        %296 = sbr.rel (%p293) target = $region48
      $region47: #{tpu_custom_call.1} parent=5 // pred_region
        %s297 = ssub.s32 %s21, 1
        %s298 = sand.u32 %s34, 1
        %s299 = scalar_lea.sflag [#allocation4], %s298
        %s300 = sand.u32 %s34, 1
        %s301 = smul.addr %s300, 32
        %s302 = scalar_lea.vmem [#allocation3], %s301
        // Predicated region
        $region49: #{tpu_custom_call.1} parent=47 // pred_check
          %p303 = pneg %p47
        $region50: #{tpu_custom_call.1} parent=47 // pred_check_branch
          %305 = sbr.rel (%p303) target = $region52
        $region51: #{tpu_custom_call.1} parent=47 // pred_region
          %307 = dma.done %s299, 512
        $region52: #{tpu_custom_call.1} parent=47 // pred_fallthru
          _
        // Predicated region
        $region53: #{tpu_custom_call.1} parent=47 // pred_check
          %p308 = pneg %p68
        $region54: #{tpu_custom_call.1} parent=47 // pred_check_branch
          %310 = sbr.rel (%p308) target = $region56
        $region55: #{tpu_custom_call.1} parent=47 // pred_region
          %312 = dma.done [#allocation7], 1024
        $region56: #{tpu_custom_call.1} parent=47 // pred_fallthru
          _
        // Predicated region
        $region57: #{tpu_custom_call.1} parent=47 // pred_check
          %p313 = pneg %p89
        $region58: #{tpu_custom_call.1} parent=47 // pred_check_branch
          %315 = sbr.rel (%p313) target = $region60
        $region59: #{tpu_custom_call.1} parent=47 // pred_region
          %317 = dma.done [#allocation7], 9216
        $region60: #{tpu_custom_call.1} parent=47 // pred_fallthru
          _
        // Predicated region
        $region61: #{tpu_custom_call.1} parent=47 // pred_check
          %p318 = pneg %p110
        $region62: #{tpu_custom_call.1} parent=47 // pred_check_branch
          %320 = sbr.rel (%p318) target = $region64
        $region63: #{tpu_custom_call.1} parent=47 // pred_region
          %322 = dma.done [#allocation10], 1024
        $region64: #{tpu_custom_call.1} parent=47 // pred_fallthru
          _
        %s323 = sand.u32 %s34, 1
        %s324 = scalar_lea.sflag [#allocation4], %s323
        %s325 = sand.u32 %s34, 1
        %s326 = smul.addr %s325, 32
        %s327 = scalar_lea.vmem [#allocation3], %s326
        %p328 = pneg %p47
        %p329 = pneg %p44
        %p330 = pneg %p68
        %p331 = pneg %p65
        %p332 = pneg %p89
        %p333 = pneg %p86
        %p334 = pneg %p110
        %p335 = pneg %p107
        %p336 = pneg %p131
        %p337 = pneg %p128
        %p338 = pneg %p152
        %p339 = pneg %p149
        %p340 = pneg %p173
        %p341 = pneg %p170
        %p342 = pneg %p199
        %p343 = pneg %p196
        %s344 = sand.u32 %s186, 1
        %s345 = scalar_lea.sflag [#allocation5], %s344
        %s346 = sand.u32 %s186, 1
        %s347 = smul.addr %s346, 64
        %s348 = scalar_lea.vmem [#allocation11], %s347
        %v349 = vld [vmem:[%s302] sm:$0xf]
        %v350 = vld [vmem:[%s302 + $0x4] sm:$0xf]
        %v351 = vld [vmem:[%s302 + $0x8] sm:$0xf]
        %v352 = vld [vmem:[%s302 + $0xc] sm:$0xf]
        %v353 = vld [vmem:[%s302 + $0x10] sm:$0xf]
        %v354 = vld [vmem:[%s302 + $0x14] sm:$0xf]
        %v355 = vld [vmem:[%s302 + $0x18] sm:$0xf]
        %v356 = vld [vmem:[%s302 + $0x1c] sm:$0xf]
        %v357 = vld [vmem:[#allocation6] sm:$0xf]
        %v358 = vld [vmem:[#allocation6 + $0x4] sm:$0xf]
        %v359 = vld [vmem:[#allocation6 + $0x8] sm:$0xf]
        %v360 = vld [vmem:[#allocation6 + $0xc] sm:$0xf]
        %v361 = vld [vmem:[#allocation6 + $0x10] sm:$0xf]
        %v362 = vld [vmem:[#allocation6 + $0x14] sm:$0xf]
        %v363 = vld [vmem:[#allocation6 + $0x18] sm:$0xf]
        %v364 = vld [vmem:[#allocation6 + $0x1c] sm:$0xf]
        %v365 = vld [vmem:[#allocation6 + $0x20] sm:$0xf]
        %v366 = vld [vmem:[#allocation6 + $0x24] sm:$0xf]
        %v367 = vld [vmem:[#allocation6 + $0x28] sm:$0xf]
        %v368 = vld [vmem:[#allocation6 + $0x2c] sm:$0xf]
        %v369 = vld [vmem:[#allocation6 + $0x30] sm:$0xf]
        %v370 = vld [vmem:[#allocation6 + $0x34] sm:$0xf]
        %v371 = vld [vmem:[#allocation6 + $0x38] sm:$0xf]
        %v372 = vld [vmem:[#allocation6 + $0x3c] sm:$0xf]
        %v373 = vld [vmem:[%s4] sm:$0x1]
        %v375 = vperm.slane %v373, 0
        %v385 = vunpack.c.l.b16 %v349
        %v386 = vunpack.c.l.b16 %v350
        %v387 = vunpack.c.l.b16 %v351
        %v388 = vunpack.c.l.b16 %v352
        %v389 = vunpack.c.l.b16 %v353
        %v390 = vunpack.c.l.b16 %v354
        %v391 = vunpack.c.l.b16 %v355
        %v392 = vunpack.c.l.b16 %v356
        %v393 = vpack.c.b16 %v386, %v385
        %v394 = vpack.c.b16 %v388, %v387
        %v395 = vpack.c.b16 %v390, %v389
        %v396 = vpack.c.b16 %v392, %v391
        %v417 = vunpack.c.l.b16 %v357
        %v418 = vunpack.c.l.b16 %v358
        %v419 = vunpack.c.l.b16 %v359
        %v420 = vunpack.c.l.b16 %v360
        %v421 = vunpack.c.l.b16 %v361
        %v422 = vunpack.c.l.b16 %v362
        %v423 = vunpack.c.l.b16 %v363
        %v424 = vunpack.c.l.b16 %v364
        %v425 = vunpack.c.l.b16 %v365
        %v426 = vunpack.c.l.b16 %v366
        %v427 = vunpack.c.l.b16 %v367
        %v428 = vunpack.c.l.b16 %v368
        %v429 = vunpack.c.l.b16 %v369
        %v430 = vunpack.c.l.b16 %v370
        %v431 = vunpack.c.l.b16 %v371
        %v432 = vunpack.c.l.b16 %v372
        %v433 = vpack.c.b16 %v418, %v417
        %v434 = vpack.c.b16 %v420, %v419
        %v435 = vpack.c.b16 %v422, %v421
        %v436 = vpack.c.b16 %v424, %v423
        %v437 = vpack.c.b16 %v426, %v425
        %v438 = vpack.c.b16 %v428, %v427
        %v439 = vpack.c.b16 %v430, %v429
        %v440 = vpack.c.b16 %v432, %v431
        %449 = vmatpush.bf16.msra.mxu0 %v440
        %450 = vmatpush.bf16.msra.mxu0 %v439
        %451 = vmatpush.bf16.msra.mxu0 %v438
        %452 = vmatpush.bf16.msra.mxu0 %v437
        %453 = vmatpush.bf16.msra.mxu0 %v436
        %454 = vmatpush.bf16.msra.mxu0 %v435
        %455 = vmatpush.bf16.msra.mxu0 %v434
        %456 = vmatpush.bf16.msra.mxu0 %v433
        %457 = vmatmul.bf16.gmra.mxu0 %v393
        %v458 = vpop.f32.mrf.mxu0
        %v459 = vadd.f32 %v375, %v458
        %v460 = vpop.f32.mrf.mxu0
        %v461 = vadd.f32 %v375, %v460
        %462 = vmatmul.bf16.gmra.mxu0 %v394
        %v463 = vpop.f32.mrf.mxu0
        %v464 = vadd.f32 %v375, %v463
        %v465 = vpop.f32.mrf.mxu0
        %v466 = vadd.f32 %v375, %v465
        %467 = vmatmul.bf16.gmra.mxu0 %v395
        %v468 = vpop.f32.mrf.mxu0
        %v469 = vadd.f32 %v375, %v468
        %v470 = vpop.f32.mrf.mxu0
        %v471 = vadd.f32 %v375, %v470
        %472 = vmatmul.bf16.gmra.mxu0 %v396
        %v473 = vpop.f32.mrf.mxu0
        %v474 = vadd.f32 %v375, %v473
        %v475 = vpop.f32.mrf.mxu0
        %v476 = vadd.f32 %v375, %v475
        %477 = vdwg.mxu0
        %v478 = vmax.f32 %v459, 0.0
        %v479 = vmax.f32 %v461, 0.0
        %v480 = vmax.f32 %v464, 0.0
        %v481 = vmax.f32 %v466, 0.0
        %v482 = vmax.f32 %v469, 0.0
        %v483 = vmax.f32 %v471, 0.0
        %v484 = vmax.f32 %v474, 0.0
        %v485 = vmax.f32 %v476, 0.0
        %486 = vst [vmem:[#allocation2] sm:$0xff] 0.0
        %487 = vst [vmem:[#allocation2 + $0x8] sm:$0xff] 0.0
        %488 = vst [vmem:[#allocation2 + $0x10] sm:$0xff] 0.0
        %489 = vst [vmem:[#allocation2 + $0x18] sm:$0xff] 0.0
        %490 = vst [vmem:[#allocation2 + $0x20] sm:$0xff] 0.0
        %491 = vst [vmem:[#allocation2 + $0x28] sm:$0xff] 0.0
        %492 = vst [vmem:[#allocation2 + $0x30] sm:$0xff] 0.0
        %493 = vst [vmem:[#allocation2 + $0x38] sm:$0xff] 0.0
        %494 = vst [vmem:[#allocation2 + $0x40] sm:$0xff] 0.0
        %495 = vst [vmem:[#allocation2 + $0x48] sm:$0xff] 0.0
        %496 = vst [vmem:[#allocation2 + $0x50] sm:$0xff] 0.0
        %497 = vst [vmem:[#allocation2 + $0x58] sm:$0xff] 0.0
        %498 = vst [vmem:[#allocation2 + $0x60] sm:$0xff] 0.0
        %499 = vst [vmem:[#allocation2 + $0x68] sm:$0xff] 0.0
        %500 = vst [vmem:[#allocation2 + $0x70] sm:$0xff] 0.0
        %501 = vst [vmem:[#allocation2 + $0x78] sm:$0xff] 0.0
        %502 = vst [vmem:[#allocation2 + $0x80] sm:$0xff] 0.0
        %503 = vst [vmem:[#allocation2 + $0x88] sm:$0xff] 0.0
        %504 = vst [vmem:[#allocation2 + $0x90] sm:$0xff] 0.0
        %505 = vst [vmem:[#allocation2 + $0x98] sm:$0xff] 0.0
        %506 = vst [vmem:[#allocation2 + $0xa0] sm:$0xff] 0.0
        %507 = vst [vmem:[#allocation2 + $0xa8] sm:$0xff] 0.0
        %508 = vst [vmem:[#allocation2 + $0xb0] sm:$0xff] 0.0
        %509 = vst [vmem:[#allocation2 + $0xb8] sm:$0xff] 0.0
        %510 = vst [vmem:[#allocation2 + $0xc0] sm:$0xff] 0.0
        %511 = vst [vmem:[#allocation2 + $0xc8] sm:$0xff] 0.0
        %512 = vst [vmem:[#allocation2 + $0xd0] sm:$0xff] 0.0
        %513 = vst [vmem:[#allocation2 + $0xd8] sm:$0xff] 0.0
        %514 = vst [vmem:[#allocation2 + $0xe0] sm:$0xff] 0.0
        %515 = vst [vmem:[#allocation2 + $0xe8] sm:$0xff] 0.0
        %s516 = scalar_lea.vmem [#allocation2], 24
        %517 = vst [vmem:[%s516 + $0x8] sm:$0xff] %v478
        %518 = vst [vmem:[%s516 + $0x20] sm:$0xff] %v479
        %519 = vst [vmem:[%s516 + $0x38] sm:$0xff] %v480
        %520 = vst [vmem:[%s516 + $0x50] sm:$0xff] %v481
        %521 = vst [vmem:[%s516 + $0x68] sm:$0xff] %v482
        %522 = vst [vmem:[%s516 + $0x80] sm:$0xff] %v483
        %523 = vst [vmem:[%s516 + $0x98] sm:$0xff] %v484
        %524 = vst [vmem:[%s516 + $0xb0] sm:$0xff] %v485
        %v525 = vld [vmem:[#allocation2 + $0x7] sm:$0xff]
        %v526 = vld [vmem:[#allocation2 + $0x1f] sm:$0xff]
        %v527 = vld [vmem:[#allocation2 + $0x37] sm:$0xff]
        %v528 = vld [vmem:[#allocation2 + $0x4f] sm:$0xff]
        %v529 = vld [vmem:[#allocation2 + $0x67] sm:$0xff]
        %v530 = vld [vmem:[#allocation2 + $0x7f] sm:$0xff]
        %v531 = vld [vmem:[#allocation2 + $0x97] sm:$0xff]
        %v532 = vld [vmem:[#allocation2 + $0xaf] sm:$0xff]
        %v533 = vld [vmem:[#allocation2 + $0x8] sm:$0xff]
        %v534 = vld [vmem:[#allocation2 + $0x20] sm:$0xff]
        %v535 = vld [vmem:[#allocation2 + $0x38] sm:$0xff]
        %v536 = vld [vmem:[#allocation2 + $0x50] sm:$0xff]
        %v537 = vld [vmem:[#allocation2 + $0x68] sm:$0xff]
        %v538 = vld [vmem:[#allocation2 + $0x80] sm:$0xff]
        %v539 = vld [vmem:[#allocation2 + $0x98] sm:$0xff]
        %v540 = vld [vmem:[#allocation2 + $0xb0] sm:$0xff]
        %v541 = vld [vmem:[#allocation2 + $0x9] sm:$0xff]
        %v542 = vld [vmem:[#allocation2 + $0x21] sm:$0xff]
        %v543 = vld [vmem:[#allocation2 + $0x39] sm:$0xff]
        %v544 = vld [vmem:[#allocation2 + $0x51] sm:$0xff]
        %v545 = vld [vmem:[#allocation2 + $0x69] sm:$0xff]
        %v546 = vld [vmem:[#allocation2 + $0x81] sm:$0xff]
        %v547 = vld [vmem:[#allocation2 + $0x99] sm:$0xff]
        %v548 = vld [vmem:[#allocation2 + $0xb1] sm:$0xff]
        %v549 = vpack.c.bf16 %v526, %v525
        %v550 = vpack.c.bf16 %v534, %v533
        %v551 = vpack.c.bf16 %v542, %v541
        %v552 = vpack.c.bf16 %v528, %v527
        %v553 = vpack.c.bf16 %v536, %v535
        %v554 = vpack.c.bf16 %v544, %v543
        %v555 = vpack.c.bf16 %v530, %v529
        %v556 = vpack.c.bf16 %v538, %v537
        %v557 = vpack.c.bf16 %v546, %v545
        %v558 = vpack.c.bf16 %v532, %v531
        %v559 = vpack.c.bf16 %v540, %v539
        %v560 = vpack.c.bf16 %v548, %v547
        %v561 = vld [vmem:[#allocation8] sm:$0xf]
        %v562 = vld [vmem:[#allocation8 + $0x4] sm:$0xf]
        %v563 = vld [vmem:[#allocation8 + $0x8] sm:$0xf]
        %v564 = vld [vmem:[#allocation8 + $0xc] sm:$0xf]
        %v565 = vld [vmem:[#allocation8 + $0x10] sm:$0xf]
        %v566 = vld [vmem:[#allocation8 + $0x14] sm:$0xf]
        %v567 = vld [vmem:[#allocation8 + $0x18] sm:$0xf]
        %v568 = vld [vmem:[#allocation8 + $0x1c] sm:$0xf]
        %v569 = vld [vmem:[#allocation8 + $0x20] sm:$0xf]
        %v570 = vld [vmem:[#allocation8 + $0x24] sm:$0xf]
        %v571 = vld [vmem:[#allocation8 + $0x28] sm:$0xf]
        %v572 = vld [vmem:[#allocation8 + $0x2c] sm:$0xf]
        %v573 = vld [vmem:[#allocation8 + $0x30] sm:$0xf]
        %v574 = vld [vmem:[#allocation8 + $0x34] sm:$0xf]
        %v575 = vld [vmem:[#allocation8 + $0x38] sm:$0xf]
        %v576 = vld [vmem:[#allocation8 + $0x3c] sm:$0xf]
        %v577 = vld [vmem:[#allocation8 + $0x40] sm:$0xf]
        %v578 = vld [vmem:[#allocation8 + $0x44] sm:$0xf]
        %v579 = vld [vmem:[#allocation8 + $0x48] sm:$0xf]
        %v580 = vld [vmem:[#allocation8 + $0x4c] sm:$0xf]
        %v581 = vld [vmem:[#allocation8 + $0x50] sm:$0xf]
        %v582 = vld [vmem:[#allocation8 + $0x54] sm:$0xf]
        %v583 = vld [vmem:[#allocation8 + $0x58] sm:$0xf]
        %v584 = vld [vmem:[#allocation8 + $0x5c] sm:$0xf]
        %v585 = vld [vmem:[#allocation8 + $0x60] sm:$0xf]
        %v586 = vld [vmem:[#allocation8 + $0x64] sm:$0xf]
        %v587 = vld [vmem:[#allocation8 + $0x68] sm:$0xf]
        %v588 = vld [vmem:[#allocation8 + $0x6c] sm:$0xf]
        %v589 = vld [vmem:[#allocation8 + $0x70] sm:$0xf]
        %v590 = vld [vmem:[#allocation8 + $0x74] sm:$0xf]
        %v591 = vld [vmem:[#allocation8 + $0x78] sm:$0xf]
        %v592 = vld [vmem:[#allocation8 + $0x7c] sm:$0xf]
        %v593 = vld [vmem:[#allocation8 + $0x80] sm:$0xf]
        %v594 = vld [vmem:[#allocation8 + $0x84] sm:$0xf]
        %v595 = vld [vmem:[#allocation8 + $0x88] sm:$0xf]
        %v596 = vld [vmem:[#allocation8 + $0x8c] sm:$0xf]
        %v597 = vld [vmem:[#allocation8 + $0x90] sm:$0xf]
        %v598 = vld [vmem:[#allocation8 + $0x94] sm:$0xf]
        %v599 = vld [vmem:[#allocation8 + $0x98] sm:$0xf]
        %v600 = vld [vmem:[#allocation8 + $0x9c] sm:$0xf]
        %v601 = vld [vmem:[#allocation8 + $0xa0] sm:$0xf]
        %v602 = vld [vmem:[#allocation8 + $0xa4] sm:$0xf]
        %v603 = vld [vmem:[#allocation8 + $0xa8] sm:$0xf]
        %v604 = vld [vmem:[#allocation8 + $0xac] sm:$0xf]
        %v605 = vld [vmem:[#allocation8 + $0xb0] sm:$0xf]
        %v606 = vld [vmem:[#allocation8 + $0xb4] sm:$0xf]
        %v607 = vld [vmem:[#allocation8 + $0xb8] sm:$0xf]
        %v608 = vld [vmem:[#allocation8 + $0xbc] sm:$0xf]
        %v609 = vld [vmem:[%s516 + $0x7] sm:$0xff]
        %v610 = vld [vmem:[%s516 + $0x1f] sm:$0xff]
        %v611 = vld [vmem:[%s516 + $0x37] sm:$0xff]
        %v612 = vld [vmem:[%s516 + $0x4f] sm:$0xff]
        %v613 = vld [vmem:[%s516 + $0x67] sm:$0xff]
        %v614 = vld [vmem:[%s516 + $0x7f] sm:$0xff]
        %v615 = vld [vmem:[%s516 + $0x97] sm:$0xff]
        %v616 = vld [vmem:[%s516 + $0xaf] sm:$0xff]
        %v617 = vld [vmem:[%s516 + $0x8] sm:$0xff]
        %v618 = vld [vmem:[%s516 + $0x20] sm:$0xff]
        %v619 = vld [vmem:[%s516 + $0x38] sm:$0xff]
        %v620 = vld [vmem:[%s516 + $0x50] sm:$0xff]
        %v621 = vld [vmem:[%s516 + $0x68] sm:$0xff]
        %v622 = vld [vmem:[%s516 + $0x80] sm:$0xff]
        %v623 = vld [vmem:[%s516 + $0x98] sm:$0xff]
        %v624 = vld [vmem:[%s516 + $0xb0] sm:$0xff]
        %v625 = vld [vmem:[%s516 + $0x9] sm:$0xff]
        %v626 = vld [vmem:[%s516 + $0x21] sm:$0xff]
        %v627 = vld [vmem:[%s516 + $0x39] sm:$0xff]
        %v628 = vld [vmem:[%s516 + $0x51] sm:$0xff]
        %v629 = vld [vmem:[%s516 + $0x69] sm:$0xff]
        %v630 = vld [vmem:[%s516 + $0x81] sm:$0xff]
        %v631 = vld [vmem:[%s516 + $0x99] sm:$0xff]
        %v632 = vld [vmem:[%s516 + $0xb1] sm:$0xff]
        %v633 = vpack.c.bf16 %v610, %v609
        %v634 = vpack.c.bf16 %v618, %v617
        %v635 = vpack.c.bf16 %v626, %v625
        %v636 = vpack.c.bf16 %v612, %v611
        %v637 = vpack.c.bf16 %v620, %v619
        %v638 = vpack.c.bf16 %v628, %v627
        %v639 = vpack.c.bf16 %v614, %v613
        %v640 = vpack.c.bf16 %v622, %v621
        %v641 = vpack.c.bf16 %v630, %v629
        %v642 = vpack.c.bf16 %v616, %v615
        %v643 = vpack.c.bf16 %v624, %v623
        %v644 = vpack.c.bf16 %v632, %v631
        %s645 = scalar_lea.vmem [#allocation8], 192
        %v646 = vld [vmem:[%s645] sm:$0xf]
        %v647 = vld [vmem:[%s645 + $0x4] sm:$0xf]
        %v648 = vld [vmem:[%s645 + $0x8] sm:$0xf]
        %v649 = vld [vmem:[%s645 + $0xc] sm:$0xf]
        %v650 = vld [vmem:[%s645 + $0x10] sm:$0xf]
        %v651 = vld [vmem:[%s645 + $0x14] sm:$0xf]
        %v652 = vld [vmem:[%s645 + $0x18] sm:$0xf]
        %v653 = vld [vmem:[%s645 + $0x1c] sm:$0xf]
        %v654 = vld [vmem:[%s645 + $0x20] sm:$0xf]
        %v655 = vld [vmem:[%s645 + $0x24] sm:$0xf]
        %v656 = vld [vmem:[%s645 + $0x28] sm:$0xf]
        %v657 = vld [vmem:[%s645 + $0x2c] sm:$0xf]
        %v658 = vld [vmem:[%s645 + $0x30] sm:$0xf]
        %v659 = vld [vmem:[%s645 + $0x34] sm:$0xf]
        %v660 = vld [vmem:[%s645 + $0x38] sm:$0xf]
        %v661 = vld [vmem:[%s645 + $0x3c] sm:$0xf]
        %v662 = vld [vmem:[%s645 + $0x40] sm:$0xf]
        %v663 = vld [vmem:[%s645 + $0x44] sm:$0xf]
        %v664 = vld [vmem:[%s645 + $0x48] sm:$0xf]
        %v665 = vld [vmem:[%s645 + $0x4c] sm:$0xf]
        %v666 = vld [vmem:[%s645 + $0x50] sm:$0xf]
        %v667 = vld [vmem:[%s645 + $0x54] sm:$0xf]
        %v668 = vld [vmem:[%s645 + $0x58] sm:$0xf]
        %v669 = vld [vmem:[%s645 + $0x5c] sm:$0xf]
        %v670 = vld [vmem:[%s645 + $0x60] sm:$0xf]
        %v671 = vld [vmem:[%s645 + $0x64] sm:$0xf]
        %v672 = vld [vmem:[%s645 + $0x68] sm:$0xf]
        %v673 = vld [vmem:[%s645 + $0x6c] sm:$0xf]
        %v674 = vld [vmem:[%s645 + $0x70] sm:$0xf]
        %v675 = vld [vmem:[%s645 + $0x74] sm:$0xf]
        %v676 = vld [vmem:[%s645 + $0x78] sm:$0xf]
        %v677 = vld [vmem:[%s645 + $0x7c] sm:$0xf]
        %v678 = vld [vmem:[%s645 + $0x80] sm:$0xf]
        %v679 = vld [vmem:[%s645 + $0x84] sm:$0xf]
        %v680 = vld [vmem:[%s645 + $0x88] sm:$0xf]
        %v681 = vld [vmem:[%s645 + $0x8c] sm:$0xf]
        %v682 = vld [vmem:[%s645 + $0x90] sm:$0xf]
        %v683 = vld [vmem:[%s645 + $0x94] sm:$0xf]
        %v684 = vld [vmem:[%s645 + $0x98] sm:$0xf]
        %v685 = vld [vmem:[%s645 + $0x9c] sm:$0xf]
        %v686 = vld [vmem:[%s645 + $0xa0] sm:$0xf]
        %v687 = vld [vmem:[%s645 + $0xa4] sm:$0xf]
        %v688 = vld [vmem:[%s645 + $0xa8] sm:$0xf]
        %v689 = vld [vmem:[%s645 + $0xac] sm:$0xf]
        %v690 = vld [vmem:[%s645 + $0xb0] sm:$0xf]
        %v691 = vld [vmem:[%s645 + $0xb4] sm:$0xf]
        %v692 = vld [vmem:[%s645 + $0xb8] sm:$0xf]
        %v693 = vld [vmem:[%s645 + $0xbc] sm:$0xf]
        %v742 = vunpack.c.l.b16 %v646
        %v743 = vunpack.c.l.b16 %v647
        %v744 = vunpack.c.l.b16 %v648
        %v745 = vunpack.c.l.b16 %v649
        %v746 = vunpack.c.l.b16 %v650
        %v747 = vunpack.c.l.b16 %v651
        %v748 = vunpack.c.l.b16 %v652
        %v749 = vunpack.c.l.b16 %v653
        %v750 = vunpack.c.l.b16 %v654
        %v751 = vunpack.c.l.b16 %v655
        %v752 = vunpack.c.l.b16 %v656
        %v753 = vunpack.c.l.b16 %v657
        %v754 = vunpack.c.l.b16 %v658
        %v755 = vunpack.c.l.b16 %v659
        %v756 = vunpack.c.l.b16 %v660
        %v757 = vunpack.c.l.b16 %v661
        %v758 = vunpack.c.l.b16 %v662
        %v759 = vunpack.c.l.b16 %v663
        %v760 = vunpack.c.l.b16 %v664
        %v761 = vunpack.c.l.b16 %v665
        %v762 = vunpack.c.l.b16 %v666
        %v763 = vunpack.c.l.b16 %v667
        %v764 = vunpack.c.l.b16 %v668
        %v765 = vunpack.c.l.b16 %v669
        %v766 = vunpack.c.l.b16 %v670
        %v767 = vunpack.c.l.b16 %v671
        %v768 = vunpack.c.l.b16 %v672
        %v769 = vunpack.c.l.b16 %v673
        %v770 = vunpack.c.l.b16 %v674
        %v771 = vunpack.c.l.b16 %v675
        %v772 = vunpack.c.l.b16 %v676
        %v773 = vunpack.c.l.b16 %v677
        %v774 = vunpack.c.l.b16 %v678
        %v775 = vunpack.c.l.b16 %v679
        %v776 = vunpack.c.l.b16 %v680
        %v777 = vunpack.c.l.b16 %v681
        %v778 = vunpack.c.l.b16 %v682
        %v779 = vunpack.c.l.b16 %v683
        %v780 = vunpack.c.l.b16 %v684
        %v781 = vunpack.c.l.b16 %v685
        %v782 = vunpack.c.l.b16 %v686
        %v783 = vunpack.c.l.b16 %v687
        %v784 = vunpack.c.l.b16 %v688
        %v785 = vunpack.c.l.b16 %v689
        %v786 = vunpack.c.l.b16 %v690
        %v787 = vunpack.c.l.b16 %v691
        %v788 = vunpack.c.l.b16 %v692
        %v789 = vunpack.c.l.b16 %v693
        %v790 = vpack.c.b16 %v743, %v742
        %v791 = vpack.c.b16 %v745, %v744
        %v792 = vpack.c.b16 %v747, %v746
        %v793 = vpack.c.b16 %v749, %v748
        %v794 = vpack.c.b16 %v751, %v750
        %v795 = vpack.c.b16 %v753, %v752
        %v796 = vpack.c.b16 %v755, %v754
        %v797 = vpack.c.b16 %v757, %v756
        %v798 = vpack.c.b16 %v759, %v758
        %v799 = vpack.c.b16 %v761, %v760
        %v800 = vpack.c.b16 %v763, %v762
        %v801 = vpack.c.b16 %v765, %v764
        %v802 = vpack.c.b16 %v767, %v766
        %v803 = vpack.c.b16 %v769, %v768
        %v804 = vpack.c.b16 %v771, %v770
        %v805 = vpack.c.b16 %v773, %v772
        %v806 = vpack.c.b16 %v775, %v774
        %v807 = vpack.c.b16 %v777, %v776
        %v808 = vpack.c.b16 %v779, %v778
        %v809 = vpack.c.b16 %v781, %v780
        %v810 = vpack.c.b16 %v783, %v782
        %v811 = vpack.c.b16 %v785, %v784
        %v812 = vpack.c.b16 %v787, %v786
        %v813 = vpack.c.b16 %v789, %v788
        %838 = vmatpush.bf16.msra.mxu0 %v797
        %839 = vmatpush.bf16.msra.mxu0 %v796
        %840 = vmatpush.bf16.msra.mxu0 %v795
        %841 = vmatpush.bf16.msra.mxu0 %v794
        %842 = vmatpush.bf16.msra.mxu0 %v793
        %843 = vmatpush.bf16.msra.mxu0 %v792
        %844 = vmatpush.bf16.msra.mxu0 %v791
        %845 = vmatpush.bf16.msra.mxu0 %v790
        %846 = vmatmul.bf16.gmra.mxu0 %v633
        %v847 = vpop.f32.mrf.mxu0
        %v848 = vadd.f32 0.0, %v847
        %v849 = vpop.f32.mrf.mxu0
        %v850 = vadd.f32 0.0, %v849
        %851 = vmatmul.bf16.gmra.mxu0 %v636
        %v852 = vpop.f32.mrf.mxu0
        %v853 = vadd.f32 0.0, %v852
        %v854 = vpop.f32.mrf.mxu0
        %v855 = vadd.f32 0.0, %v854
        %856 = vmatmul.bf16.gmra.mxu0 %v639
        %v857 = vpop.f32.mrf.mxu0
        %v858 = vadd.f32 0.0, %v857
        %v859 = vpop.f32.mrf.mxu0
        %v860 = vadd.f32 0.0, %v859
        %861 = vmatmul.bf16.gmra.mxu0 %v642
        %v862 = vpop.f32.mrf.mxu0
        %v863 = vadd.f32 0.0, %v862
        %v864 = vpop.f32.mrf.mxu0
        %v865 = vadd.f32 0.0, %v864
        %866 = vdwg.mxu0
        %867 = vmatpush.bf16.msra.mxu0 %v805
        %868 = vmatpush.bf16.msra.mxu0 %v804
        %869 = vmatpush.bf16.msra.mxu0 %v803
        %870 = vmatpush.bf16.msra.mxu0 %v802
        %871 = vmatpush.bf16.msra.mxu0 %v801
        %872 = vmatpush.bf16.msra.mxu0 %v800
        %873 = vmatpush.bf16.msra.mxu0 %v799
        %874 = vmatpush.bf16.msra.mxu0 %v798
        %875 = vmatmul.bf16.gmra.mxu0 %v634
        %v876 = vpop.f32.mrf.mxu0
        %v877 = vadd.f32 %v848, %v876
        %v878 = vpop.f32.mrf.mxu0
        %v879 = vadd.f32 %v850, %v878
        %880 = vmatmul.bf16.gmra.mxu0 %v637
        %v881 = vpop.f32.mrf.mxu0
        %v882 = vadd.f32 %v853, %v881
        %v883 = vpop.f32.mrf.mxu0
        %v884 = vadd.f32 %v855, %v883
        %885 = vmatmul.bf16.gmra.mxu0 %v640
        %v886 = vpop.f32.mrf.mxu0
        %v887 = vadd.f32 %v858, %v886
        %v888 = vpop.f32.mrf.mxu0
        %v889 = vadd.f32 %v860, %v888
        %890 = vmatmul.bf16.gmra.mxu0 %v643
        %v891 = vpop.f32.mrf.mxu0
        %v892 = vadd.f32 %v863, %v891
        %v893 = vpop.f32.mrf.mxu0
        %v894 = vadd.f32 %v865, %v893
        %895 = vdwg.mxu0
        %896 = vmatpush.bf16.msra.mxu0 %v813
        %897 = vmatpush.bf16.msra.mxu0 %v812
        %898 = vmatpush.bf16.msra.mxu0 %v811
        %899 = vmatpush.bf16.msra.mxu0 %v810
        %900 = vmatpush.bf16.msra.mxu0 %v809
        %901 = vmatpush.bf16.msra.mxu0 %v808
        %902 = vmatpush.bf16.msra.mxu0 %v807
        %903 = vmatpush.bf16.msra.mxu0 %v806
        %904 = vmatmul.bf16.gmra.mxu0 %v635
        %v905 = vpop.f32.mrf.mxu0
        %v906 = vadd.f32 %v877, %v905
        %v907 = vpop.f32.mrf.mxu0
        %v908 = vadd.f32 %v879, %v907
        %909 = vmatmul.bf16.gmra.mxu0 %v638
        %v910 = vpop.f32.mrf.mxu0
        %v911 = vadd.f32 %v882, %v910
        %v912 = vpop.f32.mrf.mxu0
        %v913 = vadd.f32 %v884, %v912
        %914 = vmatmul.bf16.gmra.mxu0 %v641
        %v915 = vpop.f32.mrf.mxu0
        %v916 = vadd.f32 %v887, %v915
        %v917 = vpop.f32.mrf.mxu0
        %v918 = vadd.f32 %v889, %v917
        %919 = vmatmul.bf16.gmra.mxu0 %v644
        %v920 = vpop.f32.mrf.mxu0
        %v921 = vadd.f32 %v892, %v920
        %v922 = vpop.f32.mrf.mxu0
        %v923 = vadd.f32 %v894, %v922
        %924 = vdwg.mxu0
        %v973 = vunpack.c.l.b16 %v561
        %v974 = vunpack.c.l.b16 %v562
        %v975 = vunpack.c.l.b16 %v563
        %v976 = vunpack.c.l.b16 %v564
        %v977 = vunpack.c.l.b16 %v565
        %v978 = vunpack.c.l.b16 %v566
        %v979 = vunpack.c.l.b16 %v567
        %v980 = vunpack.c.l.b16 %v568
        %v981 = vunpack.c.l.b16 %v569
        %v982 = vunpack.c.l.b16 %v570
        %v983 = vunpack.c.l.b16 %v571
        %v984 = vunpack.c.l.b16 %v572
        %v985 = vunpack.c.l.b16 %v573
        %v986 = vunpack.c.l.b16 %v574
        %v987 = vunpack.c.l.b16 %v575
        %v988 = vunpack.c.l.b16 %v576
        %v989 = vunpack.c.l.b16 %v577
        %v990 = vunpack.c.l.b16 %v578
        %v991 = vunpack.c.l.b16 %v579
        %v992 = vunpack.c.l.b16 %v580
        %v993 = vunpack.c.l.b16 %v581
        %v994 = vunpack.c.l.b16 %v582
        %v995 = vunpack.c.l.b16 %v583
        %v996 = vunpack.c.l.b16 %v584
        %v997 = vunpack.c.l.b16 %v585
        %v998 = vunpack.c.l.b16 %v586
        %v999 = vunpack.c.l.b16 %v587
        %v1000 = vunpack.c.l.b16 %v588
        %v1001 = vunpack.c.l.b16 %v589
        %v1002 = vunpack.c.l.b16 %v590
        %v1003 = vunpack.c.l.b16 %v591
        %v1004 = vunpack.c.l.b16 %v592
        %v1005 = vunpack.c.l.b16 %v593
        %v1006 = vunpack.c.l.b16 %v594
        %v1007 = vunpack.c.l.b16 %v595
        %v1008 = vunpack.c.l.b16 %v596
        %v1009 = vunpack.c.l.b16 %v597
        %v1010 = vunpack.c.l.b16 %v598
        %v1011 = vunpack.c.l.b16 %v599
        %v1012 = vunpack.c.l.b16 %v600
        %v1013 = vunpack.c.l.b16 %v601
        %v1014 = vunpack.c.l.b16 %v602
        %v1015 = vunpack.c.l.b16 %v603
        %v1016 = vunpack.c.l.b16 %v604
        %v1017 = vunpack.c.l.b16 %v605
        %v1018 = vunpack.c.l.b16 %v606
        %v1019 = vunpack.c.l.b16 %v607
        %v1020 = vunpack.c.l.b16 %v608
        %v1021 = vpack.c.b16 %v974, %v973
        %v1022 = vpack.c.b16 %v976, %v975
        %v1023 = vpack.c.b16 %v978, %v977
        %v1024 = vpack.c.b16 %v980, %v979
        %v1025 = vpack.c.b16 %v982, %v981
        %v1026 = vpack.c.b16 %v984, %v983
        %v1027 = vpack.c.b16 %v986, %v985
        %v1028 = vpack.c.b16 %v988, %v987
        %v1029 = vpack.c.b16 %v990, %v989
        %v1030 = vpack.c.b16 %v992, %v991
        %v1031 = vpack.c.b16 %v994, %v993
        %v1032 = vpack.c.b16 %v996, %v995
        %v1033 = vpack.c.b16 %v998, %v997
        %v1034 = vpack.c.b16 %v1000, %v999
        %v1035 = vpack.c.b16 %v1002, %v1001
        %v1036 = vpack.c.b16 %v1004, %v1003
        %v1037 = vpack.c.b16 %v1006, %v1005
        %v1038 = vpack.c.b16 %v1008, %v1007
        %v1039 = vpack.c.b16 %v1010, %v1009
        %v1040 = vpack.c.b16 %v1012, %v1011
        %v1041 = vpack.c.b16 %v1014, %v1013
        %v1042 = vpack.c.b16 %v1016, %v1015
        %v1043 = vpack.c.b16 %v1018, %v1017
        %v1044 = vpack.c.b16 %v1020, %v1019
        %1069 = vmatpush.bf16.msra.mxu0 %v1028
        %1070 = vmatpush.bf16.msra.mxu0 %v1027
        %1071 = vmatpush.bf16.msra.mxu0 %v1026
        %1072 = vmatpush.bf16.msra.mxu0 %v1025
        %1073 = vmatpush.bf16.msra.mxu0 %v1024
        %1074 = vmatpush.bf16.msra.mxu0 %v1023
        %1075 = vmatpush.bf16.msra.mxu0 %v1022
        %1076 = vmatpush.bf16.msra.mxu0 %v1021
        %1077 = vmatmul.bf16.gmra.mxu0 %v549
        %v1078 = vpop.f32.mrf.mxu0
        %v1079 = vadd.f32 %v906, %v1078
        %v1080 = vpop.f32.mrf.mxu0
        %v1081 = vadd.f32 %v908, %v1080
        %1082 = vmatmul.bf16.gmra.mxu0 %v552
        %v1083 = vpop.f32.mrf.mxu0
        %v1084 = vadd.f32 %v911, %v1083
        %v1085 = vpop.f32.mrf.mxu0
        %v1086 = vadd.f32 %v913, %v1085
        %1087 = vmatmul.bf16.gmra.mxu0 %v555
        %v1088 = vpop.f32.mrf.mxu0
        %v1089 = vadd.f32 %v916, %v1088
        %v1090 = vpop.f32.mrf.mxu0
        %v1091 = vadd.f32 %v918, %v1090
        %1092 = vmatmul.bf16.gmra.mxu0 %v558
        %v1093 = vpop.f32.mrf.mxu0
        %v1094 = vadd.f32 %v921, %v1093
        %v1095 = vpop.f32.mrf.mxu0
        %v1096 = vadd.f32 %v923, %v1095
        %1097 = vdwg.mxu0
        %1098 = vmatpush.bf16.msra.mxu0 %v1036
        %1099 = vmatpush.bf16.msra.mxu0 %v1035
        %1100 = vmatpush.bf16.msra.mxu0 %v1034
        %1101 = vmatpush.bf16.msra.mxu0 %v1033
        %1102 = vmatpush.bf16.msra.mxu0 %v1032
        %1103 = vmatpush.bf16.msra.mxu0 %v1031
        %1104 = vmatpush.bf16.msra.mxu0 %v1030
        %1105 = vmatpush.bf16.msra.mxu0 %v1029
        %1106 = vmatmul.bf16.gmra.mxu0 %v550
        %v1107 = vpop.f32.mrf.mxu0
        %v1108 = vadd.f32 %v1079, %v1107
        %v1109 = vpop.f32.mrf.mxu0
        %v1110 = vadd.f32 %v1081, %v1109
        %1111 = vmatmul.bf16.gmra.mxu0 %v553
        %v1112 = vpop.f32.mrf.mxu0
        %v1113 = vadd.f32 %v1084, %v1112
        %v1114 = vpop.f32.mrf.mxu0
        %v1115 = vadd.f32 %v1086, %v1114
        %1116 = vmatmul.bf16.gmra.mxu0 %v556
        %v1117 = vpop.f32.mrf.mxu0
        %v1118 = vadd.f32 %v1089, %v1117
        %v1119 = vpop.f32.mrf.mxu0
        %v1120 = vadd.f32 %v1091, %v1119
        %1121 = vmatmul.bf16.gmra.mxu0 %v559
        %v1122 = vpop.f32.mrf.mxu0
        %v1123 = vadd.f32 %v1094, %v1122
        %v1124 = vpop.f32.mrf.mxu0
        %v1125 = vadd.f32 %v1096, %v1124
        %1126 = vdwg.mxu0
        %1127 = vmatpush.bf16.msra.mxu0 %v1044
        %1128 = vmatpush.bf16.msra.mxu0 %v1043
        %1129 = vmatpush.bf16.msra.mxu0 %v1042
        %1130 = vmatpush.bf16.msra.mxu0 %v1041
        %1131 = vmatpush.bf16.msra.mxu0 %v1040
        %1132 = vmatpush.bf16.msra.mxu0 %v1039
        %1133 = vmatpush.bf16.msra.mxu0 %v1038
        %1134 = vmatpush.bf16.msra.mxu0 %v1037
        %1135 = vmatmul.bf16.gmra.mxu0 %v551
        %v1136 = vpop.f32.mrf.mxu0
        %v1137 = vadd.f32 %v1108, %v1136
        %v1138 = vpop.f32.mrf.mxu0
        %v1139 = vadd.f32 %v1110, %v1138
        %1140 = vmatmul.bf16.gmra.mxu0 %v554
        %v1141 = vpop.f32.mrf.mxu0
        %v1142 = vadd.f32 %v1113, %v1141
        %v1143 = vpop.f32.mrf.mxu0
        %v1144 = vadd.f32 %v1115, %v1143
        %1145 = vmatmul.bf16.gmra.mxu0 %v557
        %v1146 = vpop.f32.mrf.mxu0
        %v1147 = vadd.f32 %v1118, %v1146
        %v1148 = vpop.f32.mrf.mxu0
        %v1149 = vadd.f32 %v1120, %v1148
        %1150 = vmatmul.bf16.gmra.mxu0 %v560
        %v1151 = vpop.f32.mrf.mxu0
        %v1152 = vadd.f32 %v1123, %v1151
        %v1153 = vpop.f32.mrf.mxu0
        %v1154 = vadd.f32 %v1125, %v1153
        %1155 = vdwg.mxu0
        %s1156 = scalar_lea.vmem [#allocation2], 48
        %v1157 = vld [vmem:[%s1156 + $0x7] sm:$0xff]
        %v1158 = vld [vmem:[%s1156 + $0x1f] sm:$0xff]
        %v1159 = vld [vmem:[%s1156 + $0x37] sm:$0xff]
        %v1160 = vld [vmem:[%s1156 + $0x4f] sm:$0xff]
        %v1161 = vld [vmem:[%s1156 + $0x67] sm:$0xff]
        %v1162 = vld [vmem:[%s1156 + $0x7f] sm:$0xff]
        %v1163 = vld [vmem:[%s1156 + $0x97] sm:$0xff]
        %v1164 = vld [vmem:[%s1156 + $0xaf] sm:$0xff]
        %v1165 = vld [vmem:[%s1156 + $0x8] sm:$0xff]
        %v1166 = vld [vmem:[%s1156 + $0x20] sm:$0xff]
        %v1167 = vld [vmem:[%s1156 + $0x38] sm:$0xff]
        %v1168 = vld [vmem:[%s1156 + $0x50] sm:$0xff]
        %v1169 = vld [vmem:[%s1156 + $0x68] sm:$0xff]
        %v1170 = vld [vmem:[%s1156 + $0x80] sm:$0xff]
        %v1171 = vld [vmem:[%s1156 + $0x98] sm:$0xff]
        %v1172 = vld [vmem:[%s1156 + $0xb0] sm:$0xff]
        %v1173 = vld [vmem:[%s1156 + $0x9] sm:$0xff]
        %v1174 = vld [vmem:[%s1156 + $0x21] sm:$0xff]
        %v1175 = vld [vmem:[%s1156 + $0x39] sm:$0xff]
        %v1176 = vld [vmem:[%s1156 + $0x51] sm:$0xff]
        %v1177 = vld [vmem:[%s1156 + $0x69] sm:$0xff]
        %v1178 = vld [vmem:[%s1156 + $0x81] sm:$0xff]
        %v1179 = vld [vmem:[%s1156 + $0x99] sm:$0xff]
        %v1180 = vld [vmem:[%s1156 + $0xb1] sm:$0xff]
        %v1181 = vpack.c.bf16 %v1158, %v1157
        %v1182 = vpack.c.bf16 %v1166, %v1165
        %v1183 = vpack.c.bf16 %v1174, %v1173
        %v1184 = vpack.c.bf16 %v1160, %v1159
        %v1185 = vpack.c.bf16 %v1168, %v1167
        %v1186 = vpack.c.bf16 %v1176, %v1175
        %v1187 = vpack.c.bf16 %v1162, %v1161
        %v1188 = vpack.c.bf16 %v1170, %v1169
        %v1189 = vpack.c.bf16 %v1178, %v1177
        %v1190 = vpack.c.bf16 %v1164, %v1163
        %v1191 = vpack.c.bf16 %v1172, %v1171
        %v1192 = vpack.c.bf16 %v1180, %v1179
        %s1193 = scalar_lea.vmem [#allocation8], 384
        %v1194 = vld [vmem:[%s1193] sm:$0xf]
        %v1195 = vld [vmem:[%s1193 + $0x4] sm:$0xf]
        %v1196 = vld [vmem:[%s1193 + $0x8] sm:$0xf]
        %v1197 = vld [vmem:[%s1193 + $0xc] sm:$0xf]
        %v1198 = vld [vmem:[%s1193 + $0x10] sm:$0xf]
        %v1199 = vld [vmem:[%s1193 + $0x14] sm:$0xf]
        %v1200 = vld [vmem:[%s1193 + $0x18] sm:$0xf]
        %v1201 = vld [vmem:[%s1193 + $0x1c] sm:$0xf]
        %v1202 = vld [vmem:[%s1193 + $0x20] sm:$0xf]
        %v1203 = vld [vmem:[%s1193 + $0x24] sm:$0xf]
        %v1204 = vld [vmem:[%s1193 + $0x28] sm:$0xf]
        %v1205 = vld [vmem:[%s1193 + $0x2c] sm:$0xf]
        %v1206 = vld [vmem:[%s1193 + $0x30] sm:$0xf]
        %v1207 = vld [vmem:[%s1193 + $0x34] sm:$0xf]
        %v1208 = vld [vmem:[%s1193 + $0x38] sm:$0xf]
        %v1209 = vld [vmem:[%s1193 + $0x3c] sm:$0xf]
        %v1210 = vld [vmem:[%s1193 + $0x40] sm:$0xf]
        %v1211 = vld [vmem:[%s1193 + $0x44] sm:$0xf]
        %v1212 = vld [vmem:[%s1193 + $0x48] sm:$0xf]
        %v1213 = vld [vmem:[%s1193 + $0x4c] sm:$0xf]
        %v1214 = vld [vmem:[%s1193 + $0x50] sm:$0xf]
        %v1215 = vld [vmem:[%s1193 + $0x54] sm:$0xf]
        %v1216 = vld [vmem:[%s1193 + $0x58] sm:$0xf]
        %v1217 = vld [vmem:[%s1193 + $0x5c] sm:$0xf]
        %v1218 = vld [vmem:[%s1193 + $0x60] sm:$0xf]
        %v1219 = vld [vmem:[%s1193 + $0x64] sm:$0xf]
        %v1220 = vld [vmem:[%s1193 + $0x68] sm:$0xf]
        %v1221 = vld [vmem:[%s1193 + $0x6c] sm:$0xf]
        %v1222 = vld [vmem:[%s1193 + $0x70] sm:$0xf]
        %v1223 = vld [vmem:[%s1193 + $0x74] sm:$0xf]
        %v1224 = vld [vmem:[%s1193 + $0x78] sm:$0xf]
        %v1225 = vld [vmem:[%s1193 + $0x7c] sm:$0xf]
        %v1226 = vld [vmem:[%s1193 + $0x80] sm:$0xf]
        %v1227 = vld [vmem:[%s1193 + $0x84] sm:$0xf]
        %v1228 = vld [vmem:[%s1193 + $0x88] sm:$0xf]
        %v1229 = vld [vmem:[%s1193 + $0x8c] sm:$0xf]
        %v1230 = vld [vmem:[%s1193 + $0x90] sm:$0xf]
        %v1231 = vld [vmem:[%s1193 + $0x94] sm:$0xf]
        %v1232 = vld [vmem:[%s1193 + $0x98] sm:$0xf]
        %v1233 = vld [vmem:[%s1193 + $0x9c] sm:$0xf]
        %v1234 = vld [vmem:[%s1193 + $0xa0] sm:$0xf]
        %v1235 = vld [vmem:[%s1193 + $0xa4] sm:$0xf]
        %v1236 = vld [vmem:[%s1193 + $0xa8] sm:$0xf]
        %v1237 = vld [vmem:[%s1193 + $0xac] sm:$0xf]
        %v1238 = vld [vmem:[%s1193 + $0xb0] sm:$0xf]
        %v1239 = vld [vmem:[%s1193 + $0xb4] sm:$0xf]
        %v1240 = vld [vmem:[%s1193 + $0xb8] sm:$0xf]
        %v1241 = vld [vmem:[%s1193 + $0xbc] sm:$0xf]
        %v1290 = vunpack.c.l.b16 %v1194
        %v1291 = vunpack.c.l.b16 %v1195
        %v1292 = vunpack.c.l.b16 %v1196
        %v1293 = vunpack.c.l.b16 %v1197
        %v1294 = vunpack.c.l.b16 %v1198
        %v1295 = vunpack.c.l.b16 %v1199
        %v1296 = vunpack.c.l.b16 %v1200
        %v1297 = vunpack.c.l.b16 %v1201
        %v1298 = vunpack.c.l.b16 %v1202
        %v1299 = vunpack.c.l.b16 %v1203
        %v1300 = vunpack.c.l.b16 %v1204
        %v1301 = vunpack.c.l.b16 %v1205
        %v1302 = vunpack.c.l.b16 %v1206
        %v1303 = vunpack.c.l.b16 %v1207
        %v1304 = vunpack.c.l.b16 %v1208
        %v1305 = vunpack.c.l.b16 %v1209
        %v1306 = vunpack.c.l.b16 %v1210
        %v1307 = vunpack.c.l.b16 %v1211
        %v1308 = vunpack.c.l.b16 %v1212
        %v1309 = vunpack.c.l.b16 %v1213
        %v1310 = vunpack.c.l.b16 %v1214
        %v1311 = vunpack.c.l.b16 %v1215
        %v1312 = vunpack.c.l.b16 %v1216
        %v1313 = vunpack.c.l.b16 %v1217
        %v1314 = vunpack.c.l.b16 %v1218
        %v1315 = vunpack.c.l.b16 %v1219
        %v1316 = vunpack.c.l.b16 %v1220
        %v1317 = vunpack.c.l.b16 %v1221
        %v1318 = vunpack.c.l.b16 %v1222
        %v1319 = vunpack.c.l.b16 %v1223
        %v1320 = vunpack.c.l.b16 %v1224
        %v1321 = vunpack.c.l.b16 %v1225
        %v1322 = vunpack.c.l.b16 %v1226
        %v1323 = vunpack.c.l.b16 %v1227
        %v1324 = vunpack.c.l.b16 %v1228
        %v1325 = vunpack.c.l.b16 %v1229
        %v1326 = vunpack.c.l.b16 %v1230
        %v1327 = vunpack.c.l.b16 %v1231
        %v1328 = vunpack.c.l.b16 %v1232
        %v1329 = vunpack.c.l.b16 %v1233
        %v1330 = vunpack.c.l.b16 %v1234
        %v1331 = vunpack.c.l.b16 %v1235
        %v1332 = vunpack.c.l.b16 %v1236
        %v1333 = vunpack.c.l.b16 %v1237
        %v1334 = vunpack.c.l.b16 %v1238
        %v1335 = vunpack.c.l.b16 %v1239
        %v1336 = vunpack.c.l.b16 %v1240
        %v1337 = vunpack.c.l.b16 %v1241
        %v1338 = vpack.c.b16 %v1291, %v1290
        %v1339 = vpack.c.b16 %v1293, %v1292
        %v1340 = vpack.c.b16 %v1295, %v1294
        %v1341 = vpack.c.b16 %v1297, %v1296
        %v1342 = vpack.c.b16 %v1299, %v1298
        %v1343 = vpack.c.b16 %v1301, %v1300
        %v1344 = vpack.c.b16 %v1303, %v1302
        %v1345 = vpack.c.b16 %v1305, %v1304
        %v1346 = vpack.c.b16 %v1307, %v1306
        %v1347 = vpack.c.b16 %v1309, %v1308
        %v1348 = vpack.c.b16 %v1311, %v1310
        %v1349 = vpack.c.b16 %v1313, %v1312
        %v1350 = vpack.c.b16 %v1315, %v1314
        %v1351 = vpack.c.b16 %v1317, %v1316
        %v1352 = vpack.c.b16 %v1319, %v1318
        %v1353 = vpack.c.b16 %v1321, %v1320
        %v1354 = vpack.c.b16 %v1323, %v1322
        %v1355 = vpack.c.b16 %v1325, %v1324
        %v1356 = vpack.c.b16 %v1327, %v1326
        %v1357 = vpack.c.b16 %v1329, %v1328
        %v1358 = vpack.c.b16 %v1331, %v1330
        %v1359 = vpack.c.b16 %v1333, %v1332
        %v1360 = vpack.c.b16 %v1335, %v1334
        %v1361 = vpack.c.b16 %v1337, %v1336
        %1386 = vmatpush.bf16.msra.mxu0 %v1345
        %1387 = vmatpush.bf16.msra.mxu0 %v1344
        %1388 = vmatpush.bf16.msra.mxu0 %v1343
        %1389 = vmatpush.bf16.msra.mxu0 %v1342
        %1390 = vmatpush.bf16.msra.mxu0 %v1341
        %1391 = vmatpush.bf16.msra.mxu0 %v1340
        %1392 = vmatpush.bf16.msra.mxu0 %v1339
        %1393 = vmatpush.bf16.msra.mxu0 %v1338
        %1394 = vmatmul.bf16.gmra.mxu0 %v1181
        %v1395 = vpop.f32.mrf.mxu0
        %v1396 = vadd.f32 0.0, %v1395
        %v1397 = vpop.f32.mrf.mxu0
        %v1398 = vadd.f32 0.0, %v1397
        %1399 = vmatmul.bf16.gmra.mxu0 %v1184
        %v1400 = vpop.f32.mrf.mxu0
        %v1401 = vadd.f32 0.0, %v1400
        %v1402 = vpop.f32.mrf.mxu0
        %v1403 = vadd.f32 0.0, %v1402
        %1404 = vmatmul.bf16.gmra.mxu0 %v1187
        %v1405 = vpop.f32.mrf.mxu0
        %v1406 = vadd.f32 0.0, %v1405
        %v1407 = vpop.f32.mrf.mxu0
        %v1408 = vadd.f32 0.0, %v1407
        %1409 = vmatmul.bf16.gmra.mxu0 %v1190
        %v1410 = vpop.f32.mrf.mxu0
        %v1411 = vadd.f32 0.0, %v1410
        %v1412 = vpop.f32.mrf.mxu0
        %v1413 = vadd.f32 0.0, %v1412
        %1414 = vdwg.mxu0
        %1415 = vmatpush.bf16.msra.mxu0 %v1353
        %1416 = vmatpush.bf16.msra.mxu0 %v1352
        %1417 = vmatpush.bf16.msra.mxu0 %v1351
        %1418 = vmatpush.bf16.msra.mxu0 %v1350
        %1419 = vmatpush.bf16.msra.mxu0 %v1349
        %1420 = vmatpush.bf16.msra.mxu0 %v1348
        %1421 = vmatpush.bf16.msra.mxu0 %v1347
        %1422 = vmatpush.bf16.msra.mxu0 %v1346
        %1423 = vmatmul.bf16.gmra.mxu0 %v1182
        %v1424 = vpop.f32.mrf.mxu0
        %v1425 = vadd.f32 %v1396, %v1424
        %v1426 = vpop.f32.mrf.mxu0
        %v1427 = vadd.f32 %v1398, %v1426
        %1428 = vmatmul.bf16.gmra.mxu0 %v1185
        %v1429 = vpop.f32.mrf.mxu0
        %v1430 = vadd.f32 %v1401, %v1429
        %v1431 = vpop.f32.mrf.mxu0
        %v1432 = vadd.f32 %v1403, %v1431
        %1433 = vmatmul.bf16.gmra.mxu0 %v1188
        %v1434 = vpop.f32.mrf.mxu0
        %v1435 = vadd.f32 %v1406, %v1434
        %v1436 = vpop.f32.mrf.mxu0
        %v1437 = vadd.f32 %v1408, %v1436
        %1438 = vmatmul.bf16.gmra.mxu0 %v1191
        %v1439 = vpop.f32.mrf.mxu0
        %v1440 = vadd.f32 %v1411, %v1439
        %v1441 = vpop.f32.mrf.mxu0
        %v1442 = vadd.f32 %v1413, %v1441
        %1443 = vdwg.mxu0
        %1444 = vmatpush.bf16.msra.mxu0 %v1361
        %1445 = vmatpush.bf16.msra.mxu0 %v1360
        %1446 = vmatpush.bf16.msra.mxu0 %v1359
        %1447 = vmatpush.bf16.msra.mxu0 %v1358
        %1448 = vmatpush.bf16.msra.mxu0 %v1357
        %1449 = vmatpush.bf16.msra.mxu0 %v1356
        %1450 = vmatpush.bf16.msra.mxu0 %v1355
        %1451 = vmatpush.bf16.msra.mxu0 %v1354
        %1452 = vmatmul.bf16.gmra.mxu0 %v1183
        %v1453 = vpop.f32.mrf.mxu0
        %v1454 = vadd.f32 %v1425, %v1453
        %v1455 = vpop.f32.mrf.mxu0
        %v1456 = vadd.f32 %v1427, %v1455
        %1457 = vmatmul.bf16.gmra.mxu0 %v1186
        %v1458 = vpop.f32.mrf.mxu0
        %v1459 = vadd.f32 %v1430, %v1458
        %v1460 = vpop.f32.mrf.mxu0
        %v1461 = vadd.f32 %v1432, %v1460
        %1462 = vmatmul.bf16.gmra.mxu0 %v1189
        %v1463 = vpop.f32.mrf.mxu0
        %v1464 = vadd.f32 %v1435, %v1463
        %v1465 = vpop.f32.mrf.mxu0
        %v1466 = vadd.f32 %v1437, %v1465
        %1467 = vmatmul.bf16.gmra.mxu0 %v1192
        %v1468 = vpop.f32.mrf.mxu0
        %v1469 = vadd.f32 %v1440, %v1468
        %v1470 = vpop.f32.mrf.mxu0
        %v1471 = vadd.f32 %v1442, %v1470
        %1472 = vdwg.mxu0
        %v1473 = vadd.f32 %v1137, %v1454
        %v1474 = vadd.f32 %v1139, %v1456
        %v1475 = vadd.f32 %v1142, %v1459
        %v1476 = vadd.f32 %v1144, %v1461
        %v1477 = vadd.f32 %v1147, %v1464
        %v1478 = vadd.f32 %v1149, %v1466
        %v1479 = vadd.f32 %v1152, %v1469
        %v1480 = vadd.f32 %v1154, %v1471
        %v1481 = vld [vmem:[%s5] sm:$0x1]
        %v1483 = vperm.slane %v1481, 0
        %v1485 = vadd.f32 %v1473, %v1483
        %v1486 = vadd.f32 %v1474, %v1483
        %v1487 = vadd.f32 %v1475, %v1483
        %v1488 = vadd.f32 %v1476, %v1483
        %v1489 = vadd.f32 %v1477, %v1483
        %v1490 = vadd.f32 %v1478, %v1483
        %v1491 = vadd.f32 %v1479, %v1483
        %v1492 = vadd.f32 %v1480, %v1483
        %v1493 = vmax.f32 %v1485, 0.0
        %v1494 = vmax.f32 %v1486, 0.0
        %v1495 = vmax.f32 %v1487, 0.0
        %v1496 = vmax.f32 %v1488, 0.0
        %v1497 = vmax.f32 %v1489, 0.0
        %v1498 = vmax.f32 %v1490, 0.0
        %v1499 = vmax.f32 %v1491, 0.0
        %v1500 = vmax.f32 %v1492, 0.0
        %v1501 = vpack.c.bf16 %v1494, %v1493
        %v1502 = vpack.c.bf16 %v1496, %v1495
        %v1503 = vpack.c.bf16 %v1498, %v1497
        %v1504 = vpack.c.bf16 %v1500, %v1499
        %v1505 = vld [vmem:[#allocation9] sm:$0xf]
        %v1506 = vld [vmem:[#allocation9 + $0x4] sm:$0xf]
        %v1507 = vld [vmem:[#allocation9 + $0x8] sm:$0xf]
        %v1508 = vld [vmem:[#allocation9 + $0xc] sm:$0xf]
        %v1509 = vld [vmem:[#allocation9 + $0x10] sm:$0xf]
        %v1510 = vld [vmem:[#allocation9 + $0x14] sm:$0xf]
        %v1511 = vld [vmem:[#allocation9 + $0x18] sm:$0xf]
        %v1512 = vld [vmem:[#allocation9 + $0x1c] sm:$0xf]
        %v1513 = vld [vmem:[#allocation9 + $0x20] sm:$0xf]
        %v1514 = vld [vmem:[#allocation9 + $0x24] sm:$0xf]
        %v1515 = vld [vmem:[#allocation9 + $0x28] sm:$0xf]
        %v1516 = vld [vmem:[#allocation9 + $0x2c] sm:$0xf]
        %v1517 = vld [vmem:[#allocation9 + $0x30] sm:$0xf]
        %v1518 = vld [vmem:[#allocation9 + $0x34] sm:$0xf]
        %v1519 = vld [vmem:[#allocation9 + $0x38] sm:$0xf]
        %v1520 = vld [vmem:[#allocation9 + $0x3c] sm:$0xf]
        %v1521 = vld [vmem:[%s6] sm:$0x1]
        %v1523 = vperm.slane %v1521, 0
        %v1541 = vunpack.c.l.b16 %v1505
        %v1542 = vunpack.c.l.b16 %v1506
        %v1543 = vunpack.c.l.b16 %v1507
        %v1544 = vunpack.c.l.b16 %v1508
        %v1545 = vunpack.c.l.b16 %v1509
        %v1546 = vunpack.c.l.b16 %v1510
        %v1547 = vunpack.c.l.b16 %v1511
        %v1548 = vunpack.c.l.b16 %v1512
        %v1549 = vunpack.c.l.b16 %v1513
        %v1550 = vunpack.c.l.b16 %v1514
        %v1551 = vunpack.c.l.b16 %v1515
        %v1552 = vunpack.c.l.b16 %v1516
        %v1553 = vunpack.c.l.b16 %v1517
        %v1554 = vunpack.c.l.b16 %v1518
        %v1555 = vunpack.c.l.b16 %v1519
        %v1556 = vunpack.c.l.b16 %v1520
        %v1557 = vpack.c.b16 %v1542, %v1541
        %v1558 = vpack.c.b16 %v1544, %v1543
        %v1559 = vpack.c.b16 %v1546, %v1545
        %v1560 = vpack.c.b16 %v1548, %v1547
        %v1561 = vpack.c.b16 %v1550, %v1549
        %v1562 = vpack.c.b16 %v1552, %v1551
        %v1563 = vpack.c.b16 %v1554, %v1553
        %v1564 = vpack.c.b16 %v1556, %v1555
        %1573 = vmatpush.bf16.msra.mxu0 %v1564
        %1574 = vmatpush.bf16.msra.mxu0 %v1563
        %1575 = vmatpush.bf16.msra.mxu0 %v1562
        %1576 = vmatpush.bf16.msra.mxu0 %v1561
        %1577 = vmatpush.bf16.msra.mxu0 %v1560
        %1578 = vmatpush.bf16.msra.mxu0 %v1559
        %1579 = vmatpush.bf16.msra.mxu0 %v1558
        %1580 = vmatpush.bf16.msra.mxu0 %v1557
        %1581 = vmatmul.bf16.gmra.mxu0 %v1501
        %v1582 = vpop.f32.mrf.mxu0
        %v1583 = vadd.f32 %v1523, %v1582
        %v1584 = vpop.f32.mrf.mxu0
        %v1585 = vadd.f32 %v1523, %v1584
        %1586 = vmatmul.bf16.gmra.mxu0 %v1502
        %v1587 = vpop.f32.mrf.mxu0
        %v1588 = vadd.f32 %v1523, %v1587
        %v1589 = vpop.f32.mrf.mxu0
        %v1590 = vadd.f32 %v1523, %v1589
        %1591 = vmatmul.bf16.gmra.mxu0 %v1503
        %v1592 = vpop.f32.mrf.mxu0
        %v1593 = vadd.f32 %v1523, %v1592
        %v1594 = vpop.f32.mrf.mxu0
        %v1595 = vadd.f32 %v1523, %v1594
        %1596 = vmatmul.bf16.gmra.mxu0 %v1504
        %v1597 = vpop.f32.mrf.mxu0
        %v1598 = vadd.f32 %v1523, %v1597
        %v1599 = vpop.f32.mrf.mxu0
        %v1600 = vadd.f32 %v1523, %v1599
        %1601 = vdwg.mxu0
        %v1602 = vld [vmem:[%s302] sm:$0xf]
        %v1603 = vld [vmem:[%s302 + $0x4] sm:$0xf]
        %v1604 = vld [vmem:[%s302 + $0x8] sm:$0xf]
        %v1605 = vld [vmem:[%s302 + $0xc] sm:$0xf]
        %v1606 = vld [vmem:[%s302 + $0x10] sm:$0xf]
        %v1607 = vld [vmem:[%s302 + $0x14] sm:$0xf]
        %v1608 = vld [vmem:[%s302 + $0x18] sm:$0xf]
        %v1609 = vld [vmem:[%s302 + $0x1c] sm:$0xf]
        %v1610 = vunpack.c.l.bf16 %v1602
        %v1611 = vunpack.c.l.bf16 %v1603
        %v1612 = vunpack.c.l.bf16 %v1604
        %v1613 = vunpack.c.l.bf16 %v1605
        %v1614 = vunpack.c.l.bf16 %v1606
        %v1615 = vunpack.c.l.bf16 %v1607
        %v1616 = vunpack.c.l.bf16 %v1608
        %v1617 = vunpack.c.l.bf16 %v1609
        %v1618 = vadd.f32 %v1583, %v1610
        %v1619 = vadd.f32 %v1585, %v1611
        %v1620 = vadd.f32 %v1588, %v1612
        %v1621 = vadd.f32 %v1590, %v1613
        %v1622 = vadd.f32 %v1593, %v1614
        %v1623 = vadd.f32 %v1595, %v1615
        %v1624 = vadd.f32 %v1598, %v1616
        %v1625 = vadd.f32 %v1600, %v1617
        %v1626 = vmax.f32 %v1618, 0.0
        %v1627 = vmax.f32 %v1619, 0.0
        %v1628 = vmax.f32 %v1620, 0.0
        %v1629 = vmax.f32 %v1621, 0.0
        %v1630 = vmax.f32 %v1622, 0.0
        %v1631 = vmax.f32 %v1623, 0.0
        %v1632 = vmax.f32 %v1624, 0.0
        %v1633 = vmax.f32 %v1625, 0.0
        %1634 = vst [vmem:[%s348] sm:$0xff] %v1626
        %1635 = vst [vmem:[%s348 + $0x8] sm:$0xff] %v1627
        %1636 = vst [vmem:[%s348 + $0x10] sm:$0xff] %v1628
        %1637 = vst [vmem:[%s348 + $0x18] sm:$0xff] %v1629
        %1638 = vst [vmem:[%s348 + $0x20] sm:$0xff] %v1630
        %1639 = vst [vmem:[%s348 + $0x28] sm:$0xff] %v1631
        %1640 = vst [vmem:[%s348 + $0x30] sm:$0xff] %v1632
        %1641 = vst [vmem:[%s348 + $0x38] sm:$0xff] %v1633
        %s1642 = sand.u32 %s186, 1
        %s1643 = scalar_lea.sflag [#allocation5], %s1642
        %s1644 = sand.u32 %s186, 1
        %s1645 = smul.addr %s1644, 64
        %s1646 = scalar_lea.vmem [#allocation11], %s1645
        // Predicated region
        $region65: #{tpu_custom_call.1} parent=47 // pred_check
          %p1647 = pneg %p196
        $region66: #{tpu_custom_call.1} parent=47 // pred_check_branch
          %1649 = sbr.rel (%p1647) target = $region68
        $region67: #{tpu_custom_call.1} parent=47 // pred_region
          %1651 = vsyncadd %s1643, 0
          %s1652 = smul.addr %s26, 8
          %s1653 = smul.addr %s1652, 8
          %s1654 = scalar_lea.hbm %s7, %s1653
          %s1655 = sshll.u32 %s1646, 4
          %s1656 = int_to_ptr.vmem [resolvable:$true] %s1655
          %s1657 = sshll.u32 %s1654, 4
          %s1658 = int_to_ptr.hbm [resolvable:$true] %s1657
          %1663 = dma.vmem_to_hbm [thread:$0]  %s1656, 1024, %s1658, %s1643, 128, 128, 8
        $region68: #{tpu_custom_call.1} parent=47 // pred_fallthru
          _
      $region48: #{tpu_custom_call.1} parent=5 // pred_fallthru
        _
      %p1664 = scmp.le.s32.totalorder 2, %s21
      // Predicated region
      $region69: #{tpu_custom_call.1} parent=5 // pred_check
        %p1665 = pneg %p1664
      $region70: #{tpu_custom_call.1} parent=5 // pred_check_branch
        %1667 = sbr.rel (%p1665) target = $region72
      $region71: #{tpu_custom_call.1} parent=5 // pred_region
        %s1668 = ssub.s32 %s21, 2
        // Predicated region
        $region73: #{tpu_custom_call.1} parent=71 // pred_check
          %p1669 = pneg %p202
        $region74: #{tpu_custom_call.1} parent=71 // pred_check_branch
          %1671 = sbr.rel (%p1669) target = $region76
        $region75: #{tpu_custom_call.1} parent=71 // pred_region
          %s1672 = sand.u32 %s187, 1
          %s1673 = scalar_lea.sflag [#allocation5], %s1672
          %s1674 = sand.u32 %s187, 1
          %s1675 = smul.addr %s1674, 64
          %s1676 = scalar_lea.vmem [#allocation11], %s1675
          %1678 = dma.done %s1673, 1024
        $region76: #{tpu_custom_call.1} parent=71 // pred_fallthru
          _
      $region72: #{tpu_custom_call.1} parent=5 // pred_fallthru
        _
    $region6: #{tpu_custom_call.1} parent=1 // loop_footer
      %s25 = sadd.s32 1, %s21
    $region7: #{tpu_custom_call.1} parent=1 // loop_footer_branch
      %20 = sbr.rel target = $region3
    $region8: #{tpu_custom_call.1} parent=1 // loop_exit
      _
    %1679 = vsyncpa [#allocation4], 1
    %s1680 = scalar_lea.sflag [#allocation4], 1
    %1681 = vsyncpa %s1680, 1
    %1682 = vsyncpa [#allocation7], 1
    %1683 = vsyncpa [#allocation10], 1
    %1684 = vsyncpa [#allocation5], 1
    %s1685 = scalar_lea.sflag [#allocation5], 1
    %1686 = vsyncpa %s1685, 1

</llo_original>
